<compile_context>
chip_gen: v7x
topology: tpu7x:2x2x1
jax: 0.10.0
libtpu: 0.0.40
codegen_flags: <defaults>
</compile_context>

<pallas_src>
import functools

import jax
import jax.numpy as jnp
from jax.experimental import pallas as pl
from jax.experimental.pallas import tpu as pltpu

EPS = 1e-5
_MIB = 1 << 20


# --------------------------------------------------------------------------------------
# Kernels
# --------------------------------------------------------------------------------------
def _conv3x3_stats_kernel(mid_ref, top_ref, bot_ref, w_ref, scale_ref, shift_ref,
                          y_ref, stats_ref, xpad_ref, *,
                          blk, W, Cin, Cout, apply_input_act, mxu_dtype):
    """One (image, row-block) step of: [BN-affine+ReLU]? -> 3x3 conv -> per-block BN stats.

    mid_ref    : (1, blk, W, Cin)   this row-block of the stage input
    top_ref    : (1, 1,  W, Cin)    image row (r*blk - 1), clamped at the top
    bot_ref    : (1, 1,  W, Cin)    image row (r*blk + blk), clamped at the bottom
    w_ref      : (3, 3, Cin, Cout)  conv weights (ky, kx, Cin, Cout), already in MXU dtype
    scale/shift: (1, Cin)           fused BN affine of the previous layer (stage-2 only)
    y_ref      : (1, blk, W, Cout)  pre-BN conv output tile
    stats_ref  : (1, 1, 8, Cout)    row 0 = per-block sum, row 1 = per-block sum(x^2)
    xpad_ref   : (blk+2, W+2, Cin)  VMEM scratch: zero-padded, activated input window
    """
    r = pl.program_id(1)
    n_r = pl.num_programs(1)

    def act(v):
        # Previous layer's fused BatchNorm affine + ReLU (stage 2 only), then MXU dtype.
        if apply_input_act:
            v = jnp.maximum(v.astype(jnp.float32) * scale_ref[...] + shift_ref[...], 0.0)
        return v.astype(mxu_dtype)

    # ---- stage the zero-padded (blk+2, W+2, Cin) input window into VMEM scratch ----
    zero_col = jnp.zeros((blk + 2, 1, Cin), mxu_dtype)
    xpad_ref[:, 0:1, :] = zero_col                       # conv zero padding, left column
    xpad_ref[:, W + 1:W + 2, :] = zero_col               # conv zero padding, right column

    xpad_ref[1:blk + 1, 1:W + 1, :] = act(mid_ref[0])    # (blk, W, Cin) data rows

    zero_row = jnp.zeros((1, W, Cin), mxu_dtype)
    top = act(top_ref[0])                                # (1, W, Cin)
    bot = act(bot_ref[0])
    xpad_ref[0:1, 1:W + 1, :] = jnp.where(r > 0, top, zero_row)
    xpad_ref[blk + 1:blk + 2, 1:W + 1, :] = jnp.where(r < n_r - 1, bot, zero_row)

    # ---- 3x3 conv as 9 K=Cin MXU matmuls over static tap slices (f32 accumulation) ----
    acc = jnp.zeros((blk * W, Cout), jnp.float32)
    for dy in range(3):
        for dx in range(3):
            tap = xpad_ref[dy:dy + blk, dx:dx + W, :].reshape(blk * W, Cin)
            acc = acc + jnp.dot(tap, w_ref[dy, dx], preferred_element_type=jnp.float32)
    # Conv bias intentionally omitted: it cancels exactly under training-mode BatchNorm.

    y_ref[...] = acc.reshape(1, blk, W, Cout).astype(y_ref.dtype)

    # ---- per-(image, row-block) partial BatchNorm statistics (combined in f32 JAX glue) ----
    s = jnp.sum(acc, axis=0, keepdims=True)              # (1, Cout)
    q = jnp.sum(acc * acc, axis=0, keepdims=True)        # (1, Cout)
    pad = jnp.zeros((6, Cout), jnp.float32)              # keep the 8-row block fully written
    stats_ref[...] = jnp.concatenate([s, q, pad], axis=0).reshape(1, 1, 8, Cout)


def _affine_relu_kernel(y_ref, scale_ref, shift_ref, o_ref):
    """Final fused BatchNorm affine + ReLU (elementwise)."""
    y = y_ref[...].astype(jnp.float32)
    o_ref[...] = jnp.maximum(y * scale_ref[...] + shift_ref[...], 0.0).astype(o_ref.dtype)


# --------------------------------------------------------------------------------------
# pallas_call wrappers
# --------------------------------------------------------------------------------------
def _conv_stage(x_nhwc, w_taps, in_scale, in_shift, *, apply_input_act, blk,
                mxu_dtype, out_dtype, vmem_limit_bytes):
    N, H, W, c_in = x_nhwc.shape
    c_out = w_taps.shape[-1]
    n_r = H // blk
    kernel = functools.partial(
        _conv3x3_stats_kernel, blk=blk, W=W, Cin=c_in, Cout=c_out,
        apply_input_act=apply_input_act, mxu_dtype=mxu_dtype)
    return pl.pallas_call(
        kernel,
        grid=(N, n_r),
        in_specs=[
            # Row-block plus clamped 1-row top/bottom halos: the SAME HBM array bound three
            # times, all auto-pipelined Blocked specs (per-step VMEM is O(blk*W*Cin)).
            pl.BlockSpec((1, blk, W, c_in), lambda n, r: (n, r, 0, 0)),
            pl.BlockSpec((1, 1, W, c_in),
                         lambda n, r: (n, jnp.maximum(r * blk - 1, 0), 0, 0)),
            pl.BlockSpec((1, 1, W, c_in),
                         lambda n, r: (n, jnp.minimum(r * blk + blk, H - 1), 0, 0)),
            pl.BlockSpec((3, 3, c_in, c_out), lambda n, r: (0, 0, 0, 0)),
            pl.BlockSpec((1, c_in), lambda n, r: (0, 0)),
            pl.BlockSpec((1, c_in), lambda n, r: (0, 0)),
        ],
        out_specs=(
            pl.BlockSpec((1, blk, W, c_out), lambda n, r: (n, r, 0, 0)),
            pl.BlockSpec((1, 1, 8, c_out), lambda n, r: (n, r, 0, 0)),
        ),
        out_shape=(
            jax.ShapeDtypeStruct((N, H, W, c_out), out_dtype),
            jax.ShapeDtypeStruct((N, n_r, 8, c_out), jnp.float32),
        ),
        scratch_shapes=[pltpu.VMEM((blk + 2, W + 2, c_in), mxu_dtype)],
        compiler_params=pltpu.CompilerParams(
            dimension_semantics=("parallel", "parallel"),
            vmem_limit_bytes=vmem_limit_bytes,
        ),
    )(x_nhwc, x_nhwc, x_nhwc, w_taps, in_scale, in_shift)


def _affine_relu(y_nhwc, scale, shift, *, blk):
    N, H, W, C = y_nhwc.shape
    return pl.pallas_call(
        _affine_relu_kernel,
        grid=(N, H // blk),
        in_specs=[
            pl.BlockSpec((1, blk, W, C), lambda n, r: (n, r, 0, 0)),
            pl.BlockSpec((1, C), lambda n, r: (0, 0)),
            pl.BlockSpec((1, C), lambda n, r: (0, 0)),
        ],
        out_specs=pl.BlockSpec((1, blk, W, C), lambda n, r: (n, r, 0, 0)),
        out_shape=jax.ShapeDtypeStruct((N, H, W, C), jnp.float32),
        compiler_params=pltpu.CompilerParams(
            dimension_semantics=("parallel", "parallel")),
    )(y_nhwc, scale, shift)


# --------------------------------------------------------------------------------------
# Sizing helpers (trace-time only)
# --------------------------------------------------------------------------------------
def _vmem_budget_bytes():
    """~75% of the chip's per-core VMEM (96 MiB on 128 MiB parts, 48 MiB on v7x's 64 MiB),
    with a conservative 48 MiB fallback if the hardware query is unavailable."""
    try:
        cap = pltpu.get_tpu_info().vmem_capacity_bytes
    except Exception:  # trace-time hardware query only; never guards kernel execution
        cap = 64 * _MIB
    return int(min(max(cap * 3 // 4, 32 * _MIB), 96 * _MIB))


def _per_step_vmem_bytes(blk, W, c_in, c_out, in_bytes, out_bytes, mxu_bytes):
    mid = blk * W * c_in * in_bytes
    halos = 2 * W * c_in * in_bytes
    y = blk * W * c_out * out_bytes
    stats = 8 * c_out * 4
    w = 9 * c_in * c_out * mxu_bytes
    scratch = (blk + 2) * (W + 2) * c_in * mxu_bytes
    return 2 * (mid + halos + y + stats + w) + scratch   # x2: pipeline double-buffering


def _pick_block_rows(H, W, c_in, c_out, *, budget_bytes, in_bytes, inter_bytes, mxu_bytes,
                     target_rows=4096):
    """Largest divisor of H whose per-step footprint (worse of the two conv stages) fits in
    ~60% of the VMEM budget, preferring blk*W <= target_rows matmul rows per step."""
    def footprint(blk):
        s1 = _per_step_vmem_bytes(blk, W, c_in, c_out, in_bytes, inter_bytes, mxu_bytes)
        s2 = _per_step_vmem_bytes(blk, W, c_out, c_out, inter_bytes, inter_bytes, mxu_bytes)
        return max(s1, s2)

    divisors = [d for d in range(1, H + 1) if H % d == 0]
    fits = [d for d in divisors if footprint(d) <= 0.6 * budget_bytes]
    if not fits:
        return 1
    capped = [d for d in fits if d * W <= target_rows]
    return max(capped) if capped else min(fits)


# --------------------------------------------------------------------------------------
# Public forward
# --------------------------------------------------------------------------------------
def _prep_weight(w_oihw):
    """Torch OIHW (Cout, Cin, 3, 3) -> (ky, kx, Cin, Cout)."""
    return jnp.transpose(w_oihw, (2, 3, 1, 0))


def _bn_affine(stats, gamma, beta, n_per_block):
    """Fold per-(image, row-block) [sum, sum_sq] partials into a fused per-channel affine.

    Uses mean-centered per-block combination (Chan et al.) rather than a single global
    E[x^2]-E[x]^2, which is less cancellation-prone.  O(C * n_blocks) glue.
    """
    s_b = stats[:, :, 0, :]                              # (N, n_blocks, C)
    q_b = stats[:, :, 1, :]
    nb = float(n_per_block)
    total = s_b.shape[0] * s_b.shape[1] * nb
    mean_b = s_b / nb
    m2_b = q_b - s_b * mean_b                            # within-block sum of squared devs
    mean = jnp.sum(s_b, axis=(0, 1)) / total
    m2 = jnp.sum(m2_b, axis=(0, 1)) + jnp.sum(nb * (mean_b - mean) ** 2, axis=(0, 1))
    var = m2 / total                                     # biased variance (train-mode BN)
    scale = gamma * jax.lax.rsqrt(var + EPS)
    shift = beta - mean * scale
    return scale.reshape(1, -1), shift.reshape(1, -1)


def double_conv(x_nchw, params, *, mxu_dtype=jnp.bfloat16, block_rows=None,
                interstage_dtype=None):
    """DoubleConv forward.  x_nchw: (N, C_in, H, W) f32 -> (N, C_out, H, W) f32.

    Matches the PyTorch module in training mode (BatchNorm uses batch statistics).
    Conv biases are accepted for API parity but never used: they cancel under train-mode BN.
    """
    w1, _b1, g1, bt1, w2, _b2, g2, bt2 = params
    N, c_in, H, W = x_nchw.shape
    c_out = w1.shape[0]
    if interstage_dtype is None:
        interstage_dtype = mxu_dtype                     # bf16 inter-stage activations

    in_bytes = jnp.dtype(jnp.float32).itemsize
    inter_bytes = jnp.dtype(interstage_dtype).itemsize
    mxu_bytes = jnp.dtype(mxu_dtype).itemsize

    budget = _vmem_budget_bytes()
    blk = block_rows if block_rows is not None else _pick_block_rows(
        H, W, c_in, c_out, budget_bytes=budget, in_bytes=in_bytes,
        inter_bytes=inter_bytes, mxu_bytes=mxu_bytes)
    if H % blk != 0:
        raise ValueError(f"block_rows={blk} must divide H={H}")

    # NCHW <-> NHWC boundary transposes (PyTorch interface is NCHW); an NHWC end-to-end
    # UNet would remove both and keep every Pallas store lane-dense.
    x_nhwc = jnp.transpose(x_nchw, (0, 2, 3, 1)).astype(jnp.float32)

    w1_t = _prep_weight(w1).astype(mxu_dtype)
    w2_t = _prep_weight(w2).astype(mxu_dtype)
    one = jnp.ones((1, c_in), jnp.float32)
    zero = jnp.zeros((1, c_in), jnp.float32)

    y1, st1 = _conv_stage(x_nhwc, w1_t, one, zero, apply_input_act=False, blk=blk,
                          mxu_dtype=mxu_dtype, out_dtype=interstage_dtype,
                          vmem_limit_bytes=budget)
    scale1, shift1 = _bn_affine(st1, g1, bt1, blk * W)

    y2, st2 = _conv_stage(y1, w2_t, scale1, shift1, apply_input_act=True, blk=blk,
                          mxu_dtype=mxu_dtype, out_dtype=interstage_dtype,
                          vmem_limit_bytes=budget)
    scale2, shift2 = _bn_affine(st2, g2, bt2, blk * W)

    out_nhwc = _affine_relu(y2, scale2, shift2, blk=blk)
    return jnp.transpose(out_nhwc, (0, 3, 1, 2))


# --------------------------------------------------------------------------------------
# Reference + test harness
# --------------------------------------------------------------------------------------
def _reference(x_nchw, params):
    """Pure-JAX/XLA f32 reference of the PyTorch forward (training-mode BN, with biases)."""
    w1, b1, g1, bt1, w2, b2, g2, bt2 = params

    def conv_bn_relu(x, w, b, g, bt):
        y = jax.lax.conv_general_dilated(
            x, w, window_strides=(1, 1), padding=((1, 1), (1, 1)),
            dimension_numbers=("NCHW", "OIHW", "NCHW"),
            precision=jax.lax.Precision.HIGHEST)
        y = y + b[None, :, None, None]
        mean = jnp.mean(y, axis=(0, 2, 3), keepdims=True)
        var = jnp.mean((y - mean) ** 2, axis=(0, 2, 3), keepdims=True)
        y = (y - mean) * jax.lax.rsqrt(var + EPS)
        y = y * g[None, :, None, None] + bt[None, :, None, None]
        return jnp.maximum(y, 0.0)

    h = conv_bn_relu(x_nchw, w1, b1, g1, bt1)
    return conv_bn_relu(h, w2, b2, g2, bt2)


def make_params(key, in_ch, out_ch):
    ks = jax.random.split(key, 8)
    fan1, fan2 = in_ch * 9, out_ch * 9
    w1 = jax.random.normal(ks[0], (out_ch, in_ch, 3, 3), jnp.float32) / jnp.sqrt(fan1)
    b1 = jax.random.normal(ks[1], (out_ch,), jnp.float32) * 0.05
    g1 = 1.0 + 0.1 * jax.random.normal(ks[2], (out_ch,), jnp.float32)
    bt1 = 0.1 * jax.random.normal(ks[3], (out_ch,), jnp.float32)
    w2 = jax.random.normal(ks[4], (out_ch, out_ch, 3, 3), jnp.float32) / jnp.sqrt(fan2)
    b2 = jax.random.normal(ks[5], (out_ch,), jnp.float32) * 0.05
    g2 = 1.0 + 0.1 * jax.random.normal(ks[6], (out_ch,), jnp.float32)
    bt2 = 0.1 * jax.random.normal(ks[7], (out_ch,), jnp.float32)
    return (w1, b1, g1, bt1, w2, b2, g2, bt2)


if __name__ == "__main__":
    key = jax.random.PRNGKey(0)
    k_x, k_p = jax.random.split(key)

    N, C_in, H, W = 2, 4, 16, 16
    C_out = 8
    x = jax.random.normal(k_x, (N, C_in, H, W), jnp.float32)
    params = make_params(k_p, C_in, C_out)

    ref = jax.block_until_ready(_reference(x, params))

    # 1) numerical-exactness config: f32 MXU operands / f32 inter-stage storage, 4-row blocks
    #    (exercises the halo row specs, boundary zeroing, and per-block stats combination).
    out_f32 = jax.block_until_ready(
        double_conv(x, params, mxu_dtype=jnp.float32, block_rows=4))
    assert out_f32.shape == (N, C_out, H, W)
    err32 = float(jnp.max(jnp.abs(out_f32 - ref)))
    assert err32 < 1e-3, f"f32 path max abs err {err32}"

    # 2) default performance config: bf16 MXU operands + bf16 inter-stage activations
    #    (f32 accumulation / f32 BN), auto row-block size from the VMEM budget.
    out_bf16 = jax.block_until_ready(double_conv(x, params))
    assert out_bf16.shape == (N, C_out, H, W)
    err16 = float(jnp.max(jnp.abs(out_bf16 - ref)))
    assert err16 < 1e-1, f"bf16 path max abs err {err16}"

    print("KERNEL_OK")
</pallas_src>

<mosaic_0001>
module attributes {stable_mosaic.version = 11 : i64} {
  func.func @_conv3x3_stats_kernel(%arg0: i32, %arg1: i32, %arg2: memref<1x4x16x4xf32, #tpu.memory_space<vmem>>, %arg3: memref<1x1x16x4xf32, #tpu.memory_space<vmem>>, %arg4: memref<1x1x16x4xf32, #tpu.memory_space<vmem>>, %arg5: memref<3x3x4x8xf32, #tpu.memory_space<vmem>>, %arg6: memref<1x4xf32, #tpu.memory_space<vmem>>, %arg7: memref<1x4xf32, #tpu.memory_space<vmem>>, %arg8: memref<1x4x16x8xf32, #tpu.memory_space<vmem>>, %arg9: memref<1x1x8x8xf32, #tpu.memory_space<vmem>>, %arg10: memref<6x18x4xf32, #tpu.memory_space<vmem>>) attributes {dimension_semantics = [#tpu.dimension_semantics<parallel>, #tpu.dimension_semantics<parallel>], iteration_bounds = array<i64: 2, 4>, scalar_prefetch = 0 : i64, scratch_operands = 1 : i64, tpu.core_type = #tpu.core_type<tc>, window_params = [{transform_indices = @transform_0, window_bounds = array<i64: 1, 4, 16, 4>}, {transform_indices = @transform_1, window_bounds = array<i64: 1, 1, 16, 4>}, {transform_indices = @transform_2, window_bounds = array<i64: 1, 1, 16, 4>}, {pipeline_mode = #tpu.pipeline_mode<synchronous>, transform_indices = @transform_3, window_bounds = array<i64: 3, 3, 4, 8>}, {pipeline_mode = #tpu.pipeline_mode<synchronous>, transform_indices = @transform_4, window_bounds = array<i64: 1, 4>}, {pipeline_mode = #tpu.pipeline_mode<synchronous>, transform_indices = @transform_5, window_bounds = array<i64: 1, 4>}, {transform_indices = @transform_6, window_bounds = array<i64: 1, 4, 16, 8>}, {transform_indices = @transform_7, window_bounds = array<i64: 1, 1, 8, 8>}]} {
    %cst = arith.constant 0.000000e+00 : f32
    %0 = vector.broadcast %cst : f32 to vector<6x1x4xf32>
    %c0 = arith.constant 0 : index
    %c0_0 = arith.constant 0 : index
    %c0_1 = arith.constant 0 : index
    %1 = vector.load %arg10[%c0, %c0_0, %c0_1] : memref<6x18x4xf32, #tpu.memory_space<vmem>>, vector<6x1x4xf32>
    tpu.vector_store %arg10[%c0, %c0_0, %c0_1], %0 {strides = array<i32>} : memref<6x18x4xf32, #tpu.memory_space<vmem>>, vector<6x1x4xf32>,
    %c0_2 = arith.constant 0 : index
    %c17 = arith.constant 17 : index
    %c0_3 = arith.constant 0 : index
    %2 = vector.load %arg10[%c0_2, %c17, %c0_3] : memref<6x18x4xf32, #tpu.memory_space<vmem>>, vector<6x1x4xf32>
    tpu.vector_store %arg10[%c0_2, %c17, %c0_3], %0 {strides = array<i32>} : memref<6x18x4xf32, #tpu.memory_space<vmem>>, vector<6x1x4xf32>,
    %c0_4 = arith.constant 0 : index
    %c0_5 = arith.constant 0 : index
    %c0_6 = arith.constant 0 : index
    %c0_7 = arith.constant 0 : index
    %3 = vector.load %arg2[%c0_4, %c0_5, %c0_6, %c0_7] : memref<1x4x16x4xf32, #tpu.memory_space<vmem>>, vector<1x4x16x4xf32>
    %4 = vector.shape_cast %3 : vector<1x4x16x4xf32> to vector<4x16x4xf32>
    %c1 = arith.constant 1 : index
    %c1_8 = arith.constant 1 : index
    %c0_9 = arith.constant 0 : index
    %5 = vector.load %arg10[%c1, %c1_8, %c0_9] : memref<6x18x4xf32, #tpu.memory_space<vmem>>, vector<4x16x4xf32>
    tpu.vector_store %arg10[%c1, %c1_8, %c0_9], %4 {strides = array<i32>} : memref<6x18x4xf32, #tpu.memory_space<vmem>>, vector<4x16x4xf32>,
    %cst_10 = arith.constant 0.000000e+00 : f32
    %6 = vector.broadcast %cst_10 : f32 to vector<1x16x4xf32>
    %c0_11 = arith.constant 0 : index
    %c0_12 = arith.constant 0 : index
    %c0_13 = arith.constant 0 : index
    %c0_14 = arith.constant 0 : index
    %7 = vector.load %arg3[%c0_11, %c0_12, %c0_13, %c0_14] : memref<1x1x16x4xf32, #tpu.memory_space<vmem>>, vector<1x1x16x4xf32>
    %8 = vector.shape_cast %7 : vector<1x1x16x4xf32> to vector<1x16x4xf32>
    %c0_15 = arith.constant 0 : index
    %c0_16 = arith.constant 0 : index
    %c0_17 = arith.constant 0 : index
    %c0_18 = arith.constant 0 : index
    %9 = vector.load %arg4[%c0_15, %c0_16, %c0_17, %c0_18] : memref<1x1x16x4xf32, #tpu.memory_space<vmem>>, vector<1x1x16x4xf32>
    %10 = vector.shape_cast %9 : vector<1x1x16x4xf32> to vector<1x16x4xf32>
    %c0_i32 = arith.constant 0 : i32
    %11 = arith.cmpi sgt, %arg1, %c0_i32 : i32
    %12 = arith.select %11, %8, %6 : vector<1x16x4xf32>
    %c0_19 = arith.constant 0 : index
    %c1_20 = arith.constant 1 : index
    %c0_21 = arith.constant 0 : index
    %13 = vector.load %arg10[%c0_19, %c1_20, %c0_21] : memref<6x18x4xf32, #tpu.memory_space<vmem>>, vector<1x16x4xf32>
    tpu.vector_store %arg10[%c0_19, %c1_20, %c0_21], %12 {strides = array<i32>} : memref<6x18x4xf32, #tpu.memory_space<vmem>>, vector<1x16x4xf32>,
    %c3_i32 = arith.constant 3 : i32
    %14 = arith.cmpi slt, %arg1, %c3_i32 : i32
    %15 = arith.select %14, %10, %6 : vector<1x16x4xf32>
    %c5 = arith.constant 5 : index
    %c1_22 = arith.constant 1 : index
    %c0_23 = arith.constant 0 : index
    %16 = vector.load %arg10[%c5, %c1_22, %c0_23] : memref<6x18x4xf32, #tpu.memory_space<vmem>>, vector<1x16x4xf32>
    tpu.vector_store %arg10[%c5, %c1_22, %c0_23], %15 {strides = array<i32>} : memref<6x18x4xf32, #tpu.memory_space<vmem>>, vector<1x16x4xf32>,
    %cst_24 = arith.constant 0.000000e+00 : f32
    %17 = vector.broadcast %cst_24 : f32 to vector<64x8xf32>
    %c0_25 = arith.constant 0 : index
    %c0_26 = arith.constant 0 : index
    %c0_27 = arith.constant 0 : index
    %18 = vector.load %arg10[%c0_25, %c0_26, %c0_27] : memref<6x18x4xf32, #tpu.memory_space<vmem>>, vector<4x16x4xf32>
    %19 = vector.shape_cast %18 : vector<4x16x4xf32> to vector<64x4xf32>
    %c0_28 = arith.constant 0 : index
    %c0_29 = arith.constant 0 : index
    %c0_30 = arith.constant 0 : index
    %c0_31 = arith.constant 0 : index
    %20 = vector.load %arg5[%c0_28, %c0_29, %c0_30, %c0_31] : memref<3x3x4x8xf32, #tpu.memory_space<vmem>>, vector<1x1x4x8xf32>
    %21 = vector.shape_cast %20 : vector<1x1x4x8xf32> to vector<4x8xf32>
    %cst_32 = arith.constant dense<0.000000e+00> : vector<64x8xf32>
    %22 = tpu.matmul %19, %21, %cst_32 {dimension_numbers = #tpu.dot_dimension_numbers<[1], [0], [0], [1], [0, 0, 1, 1], [], []>} : vector<64x4xf32>, vector<4x8xf32>, vector<64x8xf32> -> vector<64x8xf32>
    %23 = arith.addf %17, %22 : vector<64x8xf32>
    %c0_33 = arith.constant 0 : index
    %c1_34 = arith.constant 1 : index
    %c0_35 = arith.constant 0 : index
    %24 = vector.load %arg10[%c0_33, %c1_34, %c0_35] : memref<6x18x4xf32, #tpu.memory_space<vmem>>, vector<4x16x4xf32>
    %25 = vector.shape_cast %24 : vector<4x16x4xf32> to vector<64x4xf32>
    %c0_36 = arith.constant 0 : index
    %c1_37 = arith.constant 1 : index
    %c0_38 = arith.constant 0 : index
    %c0_39 = arith.constant 0 : index
    %26 = vector.load %arg5[%c0_36, %c1_37, %c0_38, %c0_39] : memref<3x3x4x8xf32, #tpu.memory_space<vmem>>, vector<1x1x4x8xf32>
    %27 = vector.shape_cast %26 : vector<1x1x4x8xf32> to vector<4x8xf32>
    %cst_40 = arith.constant dense<0.000000e+00> : vector<64x8xf32>
    %28 = tpu.matmul %25, %27, %cst_40 {dimension_numbers = #tpu.dot_dimension_numbers<[1], [0], [0], [1], [0, 0, 1, 1], [], []>} : vector<64x4xf32>, vector<4x8xf32>, vector<64x8xf32> -> vector<64x8xf32>
    %29 = arith.addf %23, %28 : vector<64x8xf32>
    %c0_41 = arith.constant 0 : index
    %c2 = arith.constant 2 : index
    %c0_42 = arith.constant 0 : index
    %30 = vector.load %arg10[%c0_41, %c2, %c0_42] : memref<6x18x4xf32, #tpu.memory_space<vmem>>, vector<4x16x4xf32>
    %31 = vector.shape_cast %30 : vector<4x16x4xf32> to vector<64x4xf32>
    %c0_43 = arith.constant 0 : index
    %c2_44 = arith.constant 2 : index
    %c0_45 = arith.constant 0 : index
    %c0_46 = arith.constant 0 : index
    %32 = vector.load %arg5[%c0_43, %c2_44, %c0_45, %c0_46] : memref<3x3x4x8xf32, #tpu.memory_space<vmem>>, vector<1x1x4x8xf32>
    %33 = vector.shape_cast %32 : vector<1x1x4x8xf32> to vector<4x8xf32>
    %cst_47 = arith.constant dense<0.000000e+00> : vector<64x8xf32>
    %34 = tpu.matmul %31, %33, %cst_47 {dimension_numbers = #tpu.dot_dimension_numbers<[1], [0], [0], [1], [0, 0, 1, 1], [], []>} : vector<64x4xf32>, vector<4x8xf32>, vector<64x8xf32> -> vector<64x8xf32>
    %35 = arith.addf %29, %34 : vector<64x8xf32>
    %c1_48 = arith.constant 1 : index
    %c0_49 = arith.constant 0 : index
    %c0_50 = arith.constant 0 : index
    %36 = vector.load %arg10[%c1_48, %c0_49, %c0_50] : memref<6x18x4xf32, #tpu.memory_space<vmem>>, vector<4x16x4xf32>
    %37 = vector.shape_cast %36 : vector<4x16x4xf32> to vector<64x4xf32>
    %c1_51 = arith.constant 1 : index
    %c0_52 = arith.constant 0 : index
    %c0_53 = arith.constant 0 : index
    %c0_54 = arith.constant 0 : index
    %38 = vector.load %arg5[%c1_51, %c0_52, %c0_53, %c0_54] : memref<3x3x4x8xf32, #tpu.memory_space<vmem>>, vector<1x1x4x8xf32>
    %39 = vector.shape_cast %38 : vector<1x1x4x8xf32> to vector<4x8xf32>
    %cst_55 = arith.constant dense<0.000000e+00> : vector<64x8xf32>
    %40 = tpu.matmul %37, %39, %cst_55 {dimension_numbers = #tpu.dot_dimension_numbers<[1], [0], [0], [1], [0, 0, 1, 1], [], []>} : vector<64x4xf32>, vector<4x8xf32>, vector<64x8xf32> -> vector<64x8xf32>
    %41 = arith.addf %35, %40 : vector<64x8xf32>
    %c1_56 = arith.constant 1 : index
    %c1_57 = arith.constant 1 : index
    %c0_58 = arith.constant 0 : index
    %42 = vector.load %arg10[%c1_56, %c1_57, %c0_58] : memref<6x18x4xf32, #tpu.memory_space<vmem>>, vector<4x16x4xf32>
    %43 = vector.shape_cast %42 : vector<4x16x4xf32> to vector<64x4xf32>
    %c1_59 = arith.constant 1 : index
    %c1_60 = arith.constant 1 : index
    %c0_61 = arith.constant 0 : index
    %c0_62 = arith.constant 0 : index
    %44 = vector.load %arg5[%c1_59, %c1_60, %c0_61, %c0_62] : memref<3x3x4x8xf32, #tpu.memory_space<vmem>>, vector<1x1x4x8xf32>
    %45 = vector.shape_cast %44 : vector<1x1x4x8xf32> to vector<4x8xf32>
    %cst_63 = arith.constant dense<0.000000e+00> : vector<64x8xf32>
    %46 = tpu.matmul %43, %45, %cst_63 {dimension_numbers = #tpu.dot_dimension_numbers<[1], [0], [0], [1], [0, 0, 1, 1], [], []>} : vector<64x4xf32>, vector<4x8xf32>, vector<64x8xf32> -> vector<64x8xf32>
    %47 = arith.addf %41, %46 : vector<64x8xf32>
    %c1_64 = arith.constant 1 : index
    %c2_65 = arith.constant 2 : index
    %c0_66 = arith.constant 0 : index
    %48 = vector.load %arg10[%c1_64, %c2_65, %c0_66] : memref<6x18x4xf32, #tpu.memory_space<vmem>>, vector<4x16x4xf32>
    %49 = vector.shape_cast %48 : vector<4x16x4xf32> to vector<64x4xf32>
    %c1_67 = arith.constant 1 : index
    %c2_68 = arith.constant 2 : index
    %c0_69 = arith.constant 0 : index
    %c0_70 = arith.constant 0 : index
    %50 = vector.load %arg5[%c1_67, %c2_68, %c0_69, %c0_70] : memref<3x3x4x8xf32, #tpu.memory_space<vmem>>, vector<1x1x4x8xf32>
    %51 = vector.shape_cast %50 : vector<1x1x4x8xf32> to vector<4x8xf32>
    %cst_71 = arith.constant dense<0.000000e+00> : vector<64x8xf32>
    %52 = tpu.matmul %49, %51, %cst_71 {dimension_numbers = #tpu.dot_dimension_numbers<[1], [0], [0], [1], [0, 0, 1, 1], [], []>} : vector<64x4xf32>, vector<4x8xf32>, vector<64x8xf32> -> vector<64x8xf32>
    %53 = arith.addf %47, %52 : vector<64x8xf32>
    %c2_72 = arith.constant 2 : index
    %c0_73 = arith.constant 0 : index
    %c0_74 = arith.constant 0 : index
    %54 = vector.load %arg10[%c2_72, %c0_73, %c0_74] : memref<6x18x4xf32, #tpu.memory_space<vmem>>, vector<4x16x4xf32>
    %55 = vector.shape_cast %54 : vector<4x16x4xf32> to vector<64x4xf32>
    %c2_75 = arith.constant 2 : index
    %c0_76 = arith.constant 0 : index
    %c0_77 = arith.constant 0 : index
    %c0_78 = arith.constant 0 : index
    %56 = vector.load %arg5[%c2_75, %c0_76, %c0_77, %c0_78] : memref<3x3x4x8xf32, #tpu.memory_space<vmem>>, vector<1x1x4x8xf32>
    %57 = vector.shape_cast %56 : vector<1x1x4x8xf32> to vector<4x8xf32>
    %cst_79 = arith.constant dense<0.000000e+00> : vector<64x8xf32>
    %58 = tpu.matmul %55, %57, %cst_79 {dimension_numbers = #tpu.dot_dimension_numbers<[1], [0], [0], [1], [0, 0, 1, 1], [], []>} : vector<64x4xf32>, vector<4x8xf32>, vector<64x8xf32> -> vector<64x8xf32>
    %59 = arith.addf %53, %58 : vector<64x8xf32>
    %c2_80 = arith.constant 2 : index
    %c1_81 = arith.constant 1 : index
    %c0_82 = arith.constant 0 : index
    %60 = vector.load %arg10[%c2_80, %c1_81, %c0_82] : memref<6x18x4xf32, #tpu.memory_space<vmem>>, vector<4x16x4xf32>
    %61 = vector.shape_cast %60 : vector<4x16x4xf32> to vector<64x4xf32>
    %c2_83 = arith.constant 2 : index
    %c1_84 = arith.constant 1 : index
    %c0_85 = arith.constant 0 : index
    %c0_86 = arith.constant 0 : index
    %62 = vector.load %arg5[%c2_83, %c1_84, %c0_85, %c0_86] : memref<3x3x4x8xf32, #tpu.memory_space<vmem>>, vector<1x1x4x8xf32>
    %63 = vector.shape_cast %62 : vector<1x1x4x8xf32> to vector<4x8xf32>
    %cst_87 = arith.constant dense<0.000000e+00> : vector<64x8xf32>
    %64 = tpu.matmul %61, %63, %cst_87 {dimension_numbers = #tpu.dot_dimension_numbers<[1], [0], [0], [1], [0, 0, 1, 1], [], []>} : vector<64x4xf32>, vector<4x8xf32>, vector<64x8xf32> -> vector<64x8xf32>
    %65 = arith.addf %59, %64 : vector<64x8xf32>
    %c2_88 = arith.constant 2 : index
    %c2_89 = arith.constant 2 : index
    %c0_90 = arith.constant 0 : index
    %66 = vector.load %arg10[%c2_88, %c2_89, %c0_90] : memref<6x18x4xf32, #tpu.memory_space<vmem>>, vector<4x16x4xf32>
    %67 = vector.shape_cast %66 : vector<4x16x4xf32> to vector<64x4xf32>
    %c2_91 = arith.constant 2 : index
    %c2_92 = arith.constant 2 : index
    %c0_93 = arith.constant 0 : index
    %c0_94 = arith.constant 0 : index
    %68 = vector.load %arg5[%c2_91, %c2_92, %c0_93, %c0_94] : memref<3x3x4x8xf32, #tpu.memory_space<vmem>>, vector<1x1x4x8xf32>
    %69 = vector.shape_cast %68 : vector<1x1x4x8xf32> to vector<4x8xf32>
    %cst_95 = arith.constant dense<0.000000e+00> : vector<64x8xf32>
    %70 = tpu.matmul %67, %69, %cst_95 {dimension_numbers = #tpu.dot_dimension_numbers<[1], [0], [0], [1], [0, 0, 1, 1], [], []>} : vector<64x4xf32>, vector<4x8xf32>, vector<64x8xf32> -> vector<64x8xf32>
    %71 = arith.addf %65, %70 : vector<64x8xf32>
    %72 = vector.shape_cast %71 : vector<64x8xf32> to vector<1x4x16x8xf32>
    %c0_96 = arith.constant 0 : index
    %c0_97 = arith.constant 0 : index
    %c0_98 = arith.constant 0 : index
    %c0_99 = arith.constant 0 : index
    %73 = vector.load %arg8[%c0_96, %c0_97, %c0_98, %c0_99] : memref<1x4x16x8xf32, #tpu.memory_space<vmem>>, vector<1x4x16x8xf32>
    tpu.vector_store %arg8[%c0_96, %c0_97, %c0_98, %c0_99], %72 {strides = array<i32>} : memref<1x4x16x8xf32, #tpu.memory_space<vmem>>, vector<1x4x16x8xf32>,
    %cst_100 = arith.constant dense<0.000000e+00> : vector<8xf32>
    %74 = vector.multi_reduction <add>, %71, %cst_100 [0] : vector<64x8xf32> to vector<8xf32>
    %75 = vector.shape_cast %74 : vector<8xf32> to vector<1x8xf32>
    %76 = arith.mulf %71, %71 : vector<64x8xf32>
    %cst_101 = arith.constant dense<0.000000e+00> : vector<8xf32>
    %77 = vector.multi_reduction <add>, %76, %cst_101 [0] : vector<64x8xf32> to vector<8xf32>
    %78 = vector.shape_cast %77 : vector<8xf32> to vector<1x8xf32>
    %cst_102 = arith.constant 0.000000e+00 : f32
    %79 = vector.broadcast %cst_102 : f32 to vector<6x8xf32>
    %80 = tpu.concatenate %75, %78, %79 in 0 : vector<1x8xf32>, vector<1x8xf32>, vector<6x8xf32> -> vector<8x8xf32>
    %81 = vector.shape_cast %80 : vector<8x8xf32> to vector<1x1x8x8xf32>
    %c0_103 = arith.constant 0 : index
    %c0_104 = arith.constant 0 : index
    %c0_105 = arith.constant 0 : index
    %c0_106 = arith.constant 0 : index
    %82 = vector.load %arg9[%c0_103, %c0_104, %c0_105, %c0_106] : memref<1x1x8x8xf32, #tpu.memory_space<vmem>>, vector<1x1x8x8xf32>
    tpu.vector_store %arg9[%c0_103, %c0_104, %c0_105, %c0_106], %81 {strides = array<i32>} : memref<1x1x8x8xf32, #tpu.memory_space<vmem>>, vector<1x1x8x8xf32>,
    return
  }
  func.func @transform_0(%arg0: i32, %arg1: i32) -> (i32, i32, i32, i32) {
    %c0_i32 = arith.constant 0 : i32
    %c0_i32_0 = arith.constant 0 : i32
    %c0_i32_1 = arith.constant 0 : i32
    return %arg0, %arg1, %c0_i32, %c0_i32_0 : i32, i32, i32, i32
  }
  func.func @transform_1(%arg0: i32, %arg1: i32) -> (i32, i32, i32, i32) {
    %c4_i32 = arith.constant 4 : i32
    %0 = arith.muli %arg1, %c4_i32 : i32
    %c1_i32 = arith.constant 1 : i32
    %1 = arith.subi %0, %c1_i32 : i32
    %c0_i32 = arith.constant 0 : i32
    %2 = arith.maxsi %1, %c0_i32 : i32
    %c0_i32_0 = arith.constant 0 : i32
    %c0_i32_1 = arith.constant 0 : i32
    %c0_i32_2 = arith.constant 0 : i32
    return %arg0, %2, %c0_i32_0, %c0_i32_1 : i32, i32, i32, i32
  }
  func.func @transform_2(%arg0: i32, %arg1: i32) -> (i32, i32, i32, i32) {
    %c4_i32 = arith.constant 4 : i32
    %0 = arith.muli %arg1, %c4_i32 : i32
    %c4_i32_0 = arith.constant 4 : i32
    %1 = arith.addi %0, %c4_i32_0 : i32
    %c15_i32 = arith.constant 15 : i32
    %2 = arith.minsi %1, %c15_i32 : i32
    %c0_i32 = arith.constant 0 : i32
    %c0_i32_1 = arith.constant 0 : i32
    %c0_i32_2 = arith.constant 0 : i32
    return %arg0, %2, %c0_i32, %c0_i32_1 : i32, i32, i32, i32
  }
  func.func @transform_3(%arg0: i32, %arg1: i32) -> (i32, i32, i32, i32) {
    %c0_i32 = arith.constant 0 : i32
    %c0_i32_0 = arith.constant 0 : i32
    %c0_i32_1 = arith.constant 0 : i32
    %c0_i32_2 = arith.constant 0 : i32
    %c0_i32_3 = arith.constant 0 : i32
    return %c0_i32, %c0_i32_0, %c0_i32_1, %c0_i32_2 : i32, i32, i32, i32
  }
  func.func @transform_4(%arg0: i32, %arg1: i32) -> (i32, i32) {
    %c0_i32 = arith.constant 0 : i32
    %c0_i32_0 = arith.constant 0 : i32
    %c0_i32_1 = arith.constant 0 : i32
    return %c0_i32, %c0_i32_0 : i32, i32
  }
  func.func @transform_5(%arg0: i32, %arg1: i32) -> (i32, i32) {
    %c0_i32 = arith.constant 0 : i32
    %c0_i32_0 = arith.constant 0 : i32
    %c0_i32_1 = arith.constant 0 : i32
    return %c0_i32, %c0_i32_0 : i32, i32
  }
  func.func @transform_6(%arg0: i32, %arg1: i32) -> (i32, i32, i32, i32) {
    %c0_i32 = arith.constant 0 : i32
    %c0_i32_0 = arith.constant 0 : i32
    %c0_i32_1 = arith.constant 0 : i32
    return %arg0, %arg1, %c0_i32, %c0_i32_0 : i32, i32, i32, i32
  }
  func.func @transform_7(%arg0: i32, %arg1: i32) -> (i32, i32, i32, i32) {
    %c0_i32 = arith.constant 0 : i32
    %c0_i32_0 = arith.constant 0 : i32
    %c0_i32_1 = arith.constant 0 : i32
    return %arg0, %arg1, %c0_i32, %c0_i32_0 : i32, i32, i32, i32
  }
}

</mosaic_0001>

<llo_original>
// kernel: tpu_custom_call.1
$region0: #{tpu_custom_call.1}
  #allocation0 [shape = 'u32[]', space=smem, size = 0x4, offset = 0x4, fixed_abs, tag = 'smem constant byte address 0x4 - core index']
  #allocation1 [shape = 'u32[144,128]{1,0:T(1,128)}', space=vmem, size = 0x12000, scoped, tag = 'internal scratch']
  #allocation2 [shape = 'f32[6,18,4]{2,1,0:T(8,128)}', space=vmem, size = 0x12000, scoped, tag = 'scratch operand']
  %s0 = inlined_call_operand.vmem [shape: f32[2,16,16,4], index: 0, kind: input, shape index: {}]
  %s1 = inlined_call_operand.vmem [shape: f32[2,16,16,4], index: 1, kind: input, shape index: {}]
  %s2 = inlined_call_operand.vmem [shape: f32[2,16,16,4], index: 2, kind: input, shape index: {}]
  %s3 = inlined_call_operand.vmem [shape: f32[3,3,4,8], index: 3, kind: input, shape index: {}]
  %s4 = inlined_call_operand.vmem [shape: f32[1,4], index: 4, kind: input, shape index: {}]
  %s5 = inlined_call_operand.vmem [shape: f32[1,4], index: 5, kind: input, shape index: {}]
  %s6 = inlined_call_operand.vmem [shape: f32[2,16,16,8], index: 6, kind: output, shape index: {0}]
  %s7 = inlined_call_operand.hbm [shape: f32[2,4,8,8], index: 7, kind: output, shape index: {1}]
  %8 = xla_tuple %s6, %s7
  %s9 = sld [smem:[#allocation0]]
  $region65: #{tpu_custom_call.1} parent=0
    _
  %s11 = ssub.s32 1, %s9
  %s12 = scalar_select 0, %s11, %s9
  $region1: #{tpu_custom_call.1} parent=0
    #allocation3 [shape = 'u8[8192]{0}', space=vmem, size = 0x2000, scoped, tag = 'output window, operand 1']
    #allocation4 [shape = 's32[2]{0}', space=sflag, size = 0x8, scoped, tag = 'scoped memory for tpu_custom_call.1']
    %13 = vsyncpa [#allocation4], 0
    %s14 = scalar_lea.sflag [#allocation4], 1
    %15 = vsyncpa %s14, 0
    loop: start=0, step=1, limit=10
    $region2: #{tpu_custom_call.1} parent=1 // loop_pre_header
      _
    $region3: #{tpu_custom_call.1} parent=1 // loop_header
      %s17 = sphi 0, %s21
      %p18 = scmp.ge.s32.totalorder %s17, 10
      %s24 = sphi 0, %s36
      %s25 = sphi 0, %s32
      %s26 = sphi 0, %s24
      %s27 = sphi 0, %s25
      %s28 = sphi 0, %s26
      %s29 = sphi 0, %s27
      %s41 = sphi 0, %s43
      %s44 = sphi 0, %s41
      %s45 = sphi 0, %s44
      %s61 = sphi 0, %s45
      %s77 = sphi 0, %s79
      %s80 = sphi 0, %s77
      %s81 = sphi 0, %s80
      %s97 = sphi 0, %s81
      %s113 = sphi 0, %s115
      %s116 = sphi 0, %s113
      %s117 = sphi 0, %s116
      %s133 = sphi 0, %s117
      %s137 = sphi 0, %s137
      %s139 = sphi 0, %s137
      %s140 = sphi 0, %s139
      %s154 = sphi 0, %s140
      %s158 = sphi 0, %s158
      %s160 = sphi 0, %s158
      %s161 = sphi 0, %s160
      %s175 = sphi 0, %s161
      %s179 = sphi 0, %s179
      %s181 = sphi 0, %s179
      %s182 = sphi 0, %s181
      %s196 = sphi 0, %s182
      %s204 = sphi 0, %s206
      %s207 = sphi 0, %s204
      %s208 = sphi 0, %s207
      %s224 = sphi 0, %s208
      %s232 = sphi 0, %s234
      %s235 = sphi 0, %s232
      %s236 = sphi 0, %s235
      %s252 = sphi 0, %s236
    $region4: #{tpu_custom_call.1} parent=1 // loop_header_branch
      %20 = sbr.rel (%p18) target = $region8
    $region5: #{tpu_custom_call.1} parent=1 // loop_body
      %s22 = ssub.s32 %s17, 1
      %s23 = ssub.s32 %s17, 2
      %s30 = sadd.s32 1, %s25
      %p31 = scmp.ge.s32.totalorder %s30, 4
      %s32 = scalar_select %p31, 0, %s30
      %s33 = sadd.s32 1, %s24
      %s34 = scalar_select %p31, %s33, %s24
      %p35 = scmp.ge.s32.totalorder %s34, 2
      %s36 = scalar_select %p35, 0, %s34
      %s37 = ssub.s32 %s24, %s36
      %s38 = ssub.s32 %s25, %s32
      %s39 = sor.u32 %s37, %s38
      %p40 = scmp.eq.s32.totalorder %s39, 0
      %s42 = sadd.s32 %s41, 1
      %s43 = scalar_select %p40, %s41, %s42
      %p46 = pneg %p40
      %p47 = scmp.eq.s32.totalorder %s17, 7
      %p48 = por %p46, %p47
      %p49 = scmp.ne.s32.totalorder %s41, %s44
      %p50 = scmp.eq.s32.totalorder %s17, 0
      %p51 = por %p49, %p50
      %p52 = scmp.ne.s32.totalorder %s41, %s44
      %p53 = scmp.eq.s32.totalorder %s22, 7
      %p54 = por %p52, %p53
      %p55 = scmp.ne.s32.totalorder %s44, %s45
      %p56 = scmp.eq.s32.totalorder %s22, 0
      %p57 = por %p55, %p56
      %p58 = scmp.ne.s32.totalorder %s44, %s45
      %p59 = scmp.eq.s32.totalorder %s23, 7
      %p60 = por %p58, %p59
      %p62 = scmp.ne.s32.totalorder %s45, %s61
      %p63 = scmp.eq.s32.totalorder %s23, 0
      %p64 = por %p62, %p63
      %s65 = smul.u32 %s25, 4
      %s66 = ssub.s32 %s65, 1
      %p67 = scmp.gt.s32.totalorder %s66, 0
      %s68 = scalar_select %p67, %s66, 0
      %s69 = smul.u32 %s32, 4
      %s70 = ssub.s32 %s69, 1
      %p71 = scmp.gt.s32.totalorder %s70, 0
      %s72 = scalar_select %p71, %s70, 0
      %s73 = ssub.s32 %s24, %s36
      %s74 = ssub.s32 %s68, %s72
      %s75 = sor.u32 %s73, %s74
      %p76 = scmp.eq.s32.totalorder %s75, 0
      %s78 = sadd.s32 %s77, 1
      %s79 = scalar_select %p76, %s77, %s78
      %p82 = pneg %p76
      %p83 = scmp.eq.s32.totalorder %s17, 7
      %p84 = por %p82, %p83
      %p85 = scmp.ne.s32.totalorder %s77, %s80
      %p86 = scmp.eq.s32.totalorder %s17, 0
      %p87 = por %p85, %p86
      %p88 = scmp.ne.s32.totalorder %s77, %s80
      %p89 = scmp.eq.s32.totalorder %s22, 7
      %p90 = por %p88, %p89
      %p91 = scmp.ne.s32.totalorder %s80, %s81
      %p92 = scmp.eq.s32.totalorder %s22, 0
      %p93 = por %p91, %p92
      %p94 = scmp.ne.s32.totalorder %s80, %s81
      %p95 = scmp.eq.s32.totalorder %s23, 7
      %p96 = por %p94, %p95
      %p98 = scmp.ne.s32.totalorder %s81, %s97
      %p99 = scmp.eq.s32.totalorder %s23, 0
      %p100 = por %p98, %p99
      %s101 = smul.u32 %s25, 4
      %s102 = sadd.s32 %s101, 4
      %p103 = scmp.lt.s32.totalorder %s102, 15
      %s104 = scalar_select %p103, %s102, 15
      %s105 = smul.u32 %s32, 4
      %s106 = sadd.s32 %s105, 4
      %p107 = scmp.lt.s32.totalorder %s106, 15
      %s108 = scalar_select %p107, %s106, 15
      %s109 = ssub.s32 %s24, %s36
      %s110 = ssub.s32 %s104, %s108
      %s111 = sor.u32 %s109, %s110
      %p112 = scmp.eq.s32.totalorder %s111, 0
      %s114 = sadd.s32 %s113, 1
      %s115 = scalar_select %p112, %s113, %s114
      %p118 = pneg %p112
      %p119 = scmp.eq.s32.totalorder %s17, 7
      %p120 = por %p118, %p119
      %p121 = scmp.ne.s32.totalorder %s113, %s116
      %p122 = scmp.eq.s32.totalorder %s17, 0
      %p123 = por %p121, %p122
      %p124 = scmp.ne.s32.totalorder %s113, %s116
      %p125 = scmp.eq.s32.totalorder %s22, 7
      %p126 = por %p124, %p125
      %p127 = scmp.ne.s32.totalorder %s116, %s117
      %p128 = scmp.eq.s32.totalorder %s22, 0
      %p129 = por %p127, %p128
      %p130 = scmp.ne.s32.totalorder %s116, %s117
      %p131 = scmp.eq.s32.totalorder %s23, 7
      %p132 = por %p130, %p131
      %p134 = scmp.ne.s32.totalorder %s117, %s133
      %p135 = scmp.eq.s32.totalorder %s23, 0
      %p136 = por %p134, %p135
      %s138 = sadd.s32 %s137, 1
      %p141 = scmp.eq.s32.totalorder %s17, 7
      %p142 = scmp.ne.s32.totalorder %s137, %s139
      %p143 = scmp.eq.s32.totalorder %s17, 0
      %p144 = por %p142, %p143
      %p145 = scmp.ne.s32.totalorder %s137, %s139
      %p146 = scmp.eq.s32.totalorder %s22, 7
      %p147 = por %p145, %p146
      %p148 = scmp.ne.s32.totalorder %s139, %s140
      %p149 = scmp.eq.s32.totalorder %s22, 0
      %p150 = por %p148, %p149
      %p151 = scmp.ne.s32.totalorder %s139, %s140
      %p152 = scmp.eq.s32.totalorder %s23, 7
      %p153 = por %p151, %p152
      %p155 = scmp.ne.s32.totalorder %s140, %s154
      %p156 = scmp.eq.s32.totalorder %s23, 0
      %p157 = por %p155, %p156
      %s159 = sadd.s32 %s158, 1
      %p162 = scmp.eq.s32.totalorder %s17, 7
      %p163 = scmp.ne.s32.totalorder %s158, %s160
      %p164 = scmp.eq.s32.totalorder %s17, 0
      %p165 = por %p163, %p164
      %p166 = scmp.ne.s32.totalorder %s158, %s160
      %p167 = scmp.eq.s32.totalorder %s22, 7
      %p168 = por %p166, %p167
      %p169 = scmp.ne.s32.totalorder %s160, %s161
      %p170 = scmp.eq.s32.totalorder %s22, 0
      %p171 = por %p169, %p170
      %p172 = scmp.ne.s32.totalorder %s160, %s161
      %p173 = scmp.eq.s32.totalorder %s23, 7
      %p174 = por %p172, %p173
      %p176 = scmp.ne.s32.totalorder %s161, %s175
      %p177 = scmp.eq.s32.totalorder %s23, 0
      %p178 = por %p176, %p177
      %s180 = sadd.s32 %s179, 1
      %p183 = scmp.eq.s32.totalorder %s17, 7
      %p184 = scmp.ne.s32.totalorder %s179, %s181
      %p185 = scmp.eq.s32.totalorder %s17, 0
      %p186 = por %p184, %p185
      %p187 = scmp.ne.s32.totalorder %s179, %s181
      %p188 = scmp.eq.s32.totalorder %s22, 7
      %p189 = por %p187, %p188
      %p190 = scmp.ne.s32.totalorder %s181, %s182
      %p191 = scmp.eq.s32.totalorder %s22, 0
      %p192 = por %p190, %p191
      %p193 = scmp.ne.s32.totalorder %s181, %s182
      %p194 = scmp.eq.s32.totalorder %s23, 7
      %p195 = por %p193, %p194
      %p197 = scmp.ne.s32.totalorder %s182, %s196
      %p198 = scmp.eq.s32.totalorder %s23, 0
      %p199 = por %p197, %p198
      %s200 = ssub.s32 %s24, %s36
      %s201 = ssub.s32 %s25, %s32
      %s202 = sor.u32 %s200, %s201
      %p203 = scmp.eq.s32.totalorder %s202, 0
      %s205 = sadd.s32 %s204, 1
      %s206 = scalar_select %p203, %s204, %s205
      %p209 = pneg %p203
      %p210 = scmp.eq.s32.totalorder %s17, 7
      %p211 = por %p209, %p210
      %p212 = scmp.ne.s32.totalorder %s204, %s207
      %p213 = scmp.eq.s32.totalorder %s17, 0
      %p214 = por %p212, %p213
      %p215 = scmp.ne.s32.totalorder %s204, %s207
      %p216 = scmp.eq.s32.totalorder %s22, 7
      %p217 = por %p215, %p216
      %p218 = scmp.ne.s32.totalorder %s207, %s208
      %p219 = scmp.eq.s32.totalorder %s22, 0
      %p220 = por %p218, %p219
      %p221 = scmp.ne.s32.totalorder %s207, %s208
      %p222 = scmp.eq.s32.totalorder %s23, 7
      %p223 = por %p221, %p222
      %p225 = scmp.ne.s32.totalorder %s208, %s224
      %p226 = scmp.eq.s32.totalorder %s23, 0
      %p227 = por %p225, %p226
      %s228 = ssub.s32 %s24, %s36
      %s229 = ssub.s32 %s25, %s32
      %s230 = sor.u32 %s228, %s229
      %p231 = scmp.eq.s32.totalorder %s230, 0
      %s233 = sadd.s32 %s232, 1
      %s234 = scalar_select %p231, %s232, %s233
      %p237 = pneg %p231
      %p238 = scmp.eq.s32.totalorder %s17, 7
      %p239 = por %p237, %p238
      %p240 = scmp.ne.s32.totalorder %s232, %s235
      %p241 = scmp.eq.s32.totalorder %s17, 0
      %p242 = por %p240, %p241
      %p243 = scmp.ne.s32.totalorder %s232, %s235
      %p244 = scmp.eq.s32.totalorder %s22, 7
      %p245 = por %p243, %p244
      %p246 = scmp.ne.s32.totalorder %s235, %s236
      %p247 = scmp.eq.s32.totalorder %s22, 0
      %p248 = por %p246, %p247
      %p249 = scmp.ne.s32.totalorder %s235, %s236
      %p250 = scmp.eq.s32.totalorder %s23, 7
      %p251 = por %p249, %p250
      %p253 = scmp.ne.s32.totalorder %s236, %s252
      %p254 = scmp.eq.s32.totalorder %s23, 0
      %p255 = por %p253, %p254
      %p256 = scmp.le.s32.totalorder 1, %s17
      %p257 = scmp.lt.s32.totalorder %s17, 9
      %p258 = pnand %p256, %p257
      %p259 = pneg %p258
      // Predicated region
      $region9: #{tpu_custom_call.1} parent=5 // pred_check
        _
      $region10: #{tpu_custom_call.1} parent=5 // pred_check_branch
        %261 = sbr.rel (%p258) target = $region12
      $region11: #{tpu_custom_call.1} parent=5 // pred_region
        %s262 = ssub.s32 %s17, 1
        // Predicated region
        $region13: #{tpu_custom_call.1} parent=11 // pred_check
          %p263 = pneg %p150
        $region14: #{tpu_custom_call.1} parent=11 // pred_check_branch
          %265 = sbr.rel (%p263) target = $region16
        $region15: #{tpu_custom_call.1} parent=11 // pred_region
          _
        $region16: #{tpu_custom_call.1} parent=11 // pred_fallthru
          _
        // Predicated region
        $region17: #{tpu_custom_call.1} parent=11 // pred_check
          %p266 = pneg %p171
        $region18: #{tpu_custom_call.1} parent=11 // pred_check_branch
          %268 = sbr.rel (%p266) target = $region20
        $region19: #{tpu_custom_call.1} parent=11 // pred_region
          _
        $region20: #{tpu_custom_call.1} parent=11 // pred_fallthru
          _
        // Predicated region
        $region21: #{tpu_custom_call.1} parent=11 // pred_check
          %p269 = pneg %p192
        $region22: #{tpu_custom_call.1} parent=11 // pred_check_branch
          %271 = sbr.rel (%p269) target = $region24
        $region23: #{tpu_custom_call.1} parent=11 // pred_region
          _
        $region24: #{tpu_custom_call.1} parent=11 // pred_fallthru
          _
      $region12: #{tpu_custom_call.1} parent=5 // pred_fallthru
        _
      %p272 = scmp.lt.s32.totalorder %s17, 8
      // Predicated region
      $region25: #{tpu_custom_call.1} parent=5 // pred_check
        %p273 = pneg %p272
      $region26: #{tpu_custom_call.1} parent=5 // pred_check_branch
        %275 = sbr.rel (%p273) target = $region28
      $region27: #{tpu_custom_call.1} parent=5 // pred_region
        // Predicated region
        $region29: #{tpu_custom_call.1} parent=27 // pred_check
          %p276 = pneg %p51
        $region30: #{tpu_custom_call.1} parent=27 // pred_check_branch
          %278 = sbr.rel (%p276) target = $region32
        $region31: #{tpu_custom_call.1} parent=27 // pred_region
          %s279 = smul.u32 4, %s25
          %p280 = scmp.lt.s32.totalorder %s24, 1
          %s281 = scalar_select %p280, %s24, 1
          %p282 = scmp.lt.s32.totalorder %s279, 15
          %s283 = scalar_select %p282, %s279, 15
          %s284 = smul.addr %s283, 2
          %s285 = smul.addr %s281, 32
          %s286 = sadd.s32 %s284, %s285
          %s287 = smul.addr %s286, 8
          %s288 = scalar_lea.vmem %s0, %s287
          %s289 = smul.u32 4, %s25
        $region32: #{tpu_custom_call.1} parent=27 // pred_fallthru
          _
        // Predicated region
        $region33: #{tpu_custom_call.1} parent=27 // pred_check
          %p290 = pneg %p87
        $region34: #{tpu_custom_call.1} parent=27 // pred_check_branch
          %292 = sbr.rel (%p290) target = $region36
        $region35: #{tpu_custom_call.1} parent=27 // pred_region
          %s293 = smul.u32 %s25, 4
          %s294 = ssub.s32 %s293, 1
          %p295 = scmp.gt.s32.totalorder %s294, 0
          %s296 = scalar_select %p295, %s294, 0
          %p297 = scmp.lt.s32.totalorder %s24, 1
          %s298 = scalar_select %p297, %s24, 1
          %p299 = scmp.lt.s32.totalorder %s296, 15
          %s300 = scalar_select %p299, %s296, 15
          %s301 = smul.addr %s300, 2
          %s302 = smul.addr %s298, 32
          %s303 = sadd.s32 %s301, %s302
          %s304 = smul.addr %s303, 8
          %s305 = scalar_lea.vmem %s1, %s304
          %s306 = smul.u32 %s25, 4
          %s307 = ssub.s32 %s306, 1
          %p308 = scmp.gt.s32.totalorder %s307, 0
          %s309 = scalar_select %p308, %s307, 0
        $region36: #{tpu_custom_call.1} parent=27 // pred_fallthru
          _
        // Predicated region
        $region37: #{tpu_custom_call.1} parent=27 // pred_check
          %p310 = pneg %p123
        $region38: #{tpu_custom_call.1} parent=27 // pred_check_branch
          %312 = sbr.rel (%p310) target = $region40
        $region39: #{tpu_custom_call.1} parent=27 // pred_region
          %s313 = smul.u32 %s25, 4
          %s314 = sadd.s32 %s313, 4
          %p315 = scmp.lt.s32.totalorder %s314, 15
          %s316 = scalar_select %p315, %s314, 15
          %p317 = scmp.lt.s32.totalorder %s24, 1
          %s318 = scalar_select %p317, %s24, 1
          %p319 = scmp.lt.s32.totalorder %s316, 15
          %s320 = scalar_select %p319, %s316, 15
          %s321 = smul.addr %s320, 2
          %s322 = smul.addr %s318, 32
          %s323 = sadd.s32 %s321, %s322
          %s324 = smul.addr %s323, 8
          %s325 = scalar_lea.vmem %s2, %s324
          %s326 = smul.u32 %s25, 4
          %s327 = sadd.s32 %s326, 4
          %p328 = scmp.lt.s32.totalorder %s327, 15
          %s329 = scalar_select %p328, %s327, 15
        $region40: #{tpu_custom_call.1} parent=27 // pred_fallthru
          _
      $region28: #{tpu_custom_call.1} parent=5 // pred_fallthru
        _
      %p330 = scmp.le.s32.totalorder 1, %s17
      %p331 = scmp.lt.s32.totalorder %s17, 9
      %p332 = pnand %p330, %p331
      %p333 = pneg %p332
      // Predicated region
      $region41: #{tpu_custom_call.1} parent=5 // pred_check
        _
      $region42: #{tpu_custom_call.1} parent=5 // pred_check_branch
        %335 = sbr.rel (%p332) target = $region44
      $region43: #{tpu_custom_call.1} parent=5 // pred_region
        %s336 = ssub.s32 %s17, 1
        %s337 = smul.u32 4, %s27
        %p338 = scmp.lt.s32.totalorder %s26, 1
        %s339 = scalar_select %p338, %s26, 1
        %p340 = scmp.lt.s32.totalorder %s337, 15
        %s341 = scalar_select %p340, %s337, 15
        %s342 = smul.addr %s341, 2
        %s343 = smul.addr %s339, 32
        %s344 = sadd.s32 %s342, %s343
        %s345 = smul.addr %s344, 8
        %s346 = scalar_lea.vmem %s0, %s345
        %p347 = pneg %p57
        %p348 = pneg %p54
        %s349 = smul.u32 %s27, 4
        %s350 = ssub.s32 %s349, 1
        %p351 = scmp.gt.s32.totalorder %s350, 0
        %s352 = scalar_select %p351, %s350, 0
        %p353 = scmp.lt.s32.totalorder %s26, 1
        %s354 = scalar_select %p353, %s26, 1
        %p355 = scmp.lt.s32.totalorder %s352, 15
        %s356 = scalar_select %p355, %s352, 15
        %s357 = smul.addr %s356, 2
        %s358 = smul.addr %s354, 32
        %s359 = sadd.s32 %s357, %s358
        %s360 = smul.addr %s359, 8
        %s361 = scalar_lea.vmem %s1, %s360
        %p362 = pneg %p93
        %p363 = pneg %p90
        %s364 = smul.u32 %s27, 4
        %s365 = sadd.s32 %s364, 4
        %p366 = scmp.lt.s32.totalorder %s365, 15
        %s367 = scalar_select %p366, %s365, 15
        %p368 = scmp.lt.s32.totalorder %s26, 1
        %s369 = scalar_select %p368, %s26, 1
        %p370 = scmp.lt.s32.totalorder %s367, 15
        %s371 = scalar_select %p370, %s367, 15
        %s372 = smul.addr %s371, 2
        %s373 = smul.addr %s369, 32
        %s374 = sadd.s32 %s372, %s373
        %s375 = smul.addr %s374, 8
        %s376 = scalar_lea.vmem %s2, %s375
        %p377 = pneg %p129
        %p378 = pneg %p126
        %p379 = pneg %p150
        %p380 = pneg %p147
        %p381 = pneg %p171
        %p382 = pneg %p168
        %p383 = pneg %p192
        %p384 = pneg %p189
        %p385 = pneg %p220
        %p386 = pneg %p217
        %s387 = smul.u32 4, %s27
        %p388 = scmp.lt.s32.totalorder %s26, 1
        %s389 = scalar_select %p388, %s26, 1
        %p390 = scmp.lt.s32.totalorder %s387, 15
        %s391 = scalar_select %p390, %s387, 15
        %s392 = smul.addr %s391, 2
        %s393 = smul.addr %s389, 32
        %s394 = sadd.s32 %s392, %s393
        %s395 = smul.addr %s394, 8
        %s396 = scalar_lea.vmem %s6, %s395
        %p397 = pneg %p248
        %p398 = pneg %p245
        %s399 = sand.u32 %s235, 1
        %s400 = scalar_lea.sflag [#allocation4], %s399
        %s401 = sand.u32 %s235, 1
        %s402 = smul.addr %s401, 8
        %s403 = scalar_lea.vmem [#allocation3], %s402
        %s404 = smul.u32 4, %s27
        %p405 = scmp.lt.s32.totalorder %s26, 1
        %s406 = scalar_select %p405, %s26, 1
        %p407 = scmp.lt.s32.totalorder %s404, 15
        %s408 = scalar_select %p407, %s404, 15
        %s409 = smul.addr %s408, 2
        %s410 = smul.addr %s406, 32
        %s411 = sadd.s32 %s409, %s410
        %s412 = smul.addr %s411, 8
        %s413 = scalar_lea.vmem %s0, %s412
        %s414 = smul.u32 4, %s27
        %s415 = smul.u32 %s27, 4
        %s416 = ssub.s32 %s415, 1
        %p417 = scmp.gt.s32.totalorder %s416, 0
        %s418 = scalar_select %p417, %s416, 0
        %p419 = scmp.lt.s32.totalorder %s26, 1
        %s420 = scalar_select %p419, %s26, 1
        %p421 = scmp.lt.s32.totalorder %s418, 15
        %s422 = scalar_select %p421, %s418, 15
        %s423 = smul.addr %s422, 2
        %s424 = smul.addr %s420, 32
        %s425 = sadd.s32 %s423, %s424
        %s426 = smul.addr %s425, 8
        %s427 = scalar_lea.vmem %s1, %s426
        %s428 = smul.u32 %s27, 4
        %s429 = ssub.s32 %s428, 1
        %p430 = scmp.gt.s32.totalorder %s429, 0
        %s431 = scalar_select %p430, %s429, 0
        %s432 = smul.u32 %s27, 4
        %s433 = sadd.s32 %s432, 4
        %p434 = scmp.lt.s32.totalorder %s433, 15
        %s435 = scalar_select %p434, %s433, 15
        %p436 = scmp.lt.s32.totalorder %s26, 1
        %s437 = scalar_select %p436, %s26, 1
        %p438 = scmp.lt.s32.totalorder %s435, 15
        %s439 = scalar_select %p438, %s435, 15
        %s440 = smul.addr %s439, 2
        %s441 = smul.addr %s437, 32
        %s442 = sadd.s32 %s440, %s441
        %s443 = smul.addr %s442, 8
        %s444 = scalar_lea.vmem %s2, %s443
        %s445 = smul.u32 %s27, 4
        %s446 = sadd.s32 %s445, 4
        %p447 = scmp.lt.s32.totalorder %s446, 15
        %s448 = scalar_select %p447, %s446, 15
        %s449 = smul.u32 4, %s27
        %p450 = scmp.lt.s32.totalorder %s26, 1
        %s451 = scalar_select %p450, %s26, 1
        %p452 = scmp.lt.s32.totalorder %s449, 15
        %s453 = scalar_select %p452, %s449, 15
        %s454 = smul.addr %s453, 2
        %s455 = smul.addr %s451, 32
        %s456 = sadd.s32 %s454, %s455
        %s457 = smul.addr %s456, 8
        %s458 = scalar_lea.vmem %s6, %s457
        %s459 = smul.u32 4, %s27
        %vm460 = vcmask 24576
        %461 = vst.msk [vmem:[#allocation2] sm:$0x1] %vm460, 0.0
        %462 = vst.msk [vmem:[#allocation2 + $0x18] sm:$0x1] %vm460, 0.0
        %463 = vst.msk [vmem:[#allocation2 + $0x30] sm:$0x1] %vm460, 0.0
        %464 = vst.msk [vmem:[#allocation2 + $0x48] sm:$0x1] %vm460, 0.0
        %465 = vst.msk [vmem:[#allocation2 + $0x60] sm:$0x1] %vm460, 0.0
        %466 = vst.msk [vmem:[#allocation2 + $0x78] sm:$0x1] %vm460, 0.0
        %467 = vst.msk [vmem:[#allocation2 + $0x11] sm:$0x1] %vm460, 0.0
        %468 = vst.msk [vmem:[#allocation2 + $0x29] sm:$0x1] %vm460, 0.0
        %469 = vst.msk [vmem:[#allocation2 + $0x41] sm:$0x1] %vm460, 0.0
        %470 = vst.msk [vmem:[#allocation2 + $0x59] sm:$0x1] %vm460, 0.0
        %471 = vst.msk [vmem:[#allocation2 + $0x71] sm:$0x1] %vm460, 0.0
        %472 = vst.msk [vmem:[#allocation2 + $0x89] sm:$0x1] %vm460, 0.0
        %v473 = vld [vmem:[%s413] sm:$0xff]
        %v474 = vld [vmem:[%s413 + $0x8] sm:$0xff]
        %v475 = vld [vmem:[%s413 + $0x10] sm:$0xff]
        %v476 = vld [vmem:[%s413 + $0x18] sm:$0xff]
        %v477 = vld [vmem:[%s413 + $0x20] sm:$0xff]
        %v478 = vld [vmem:[%s413 + $0x28] sm:$0xff]
        %v479 = vld [vmem:[%s413 + $0x30] sm:$0xff]
        %v480 = vld [vmem:[%s413 + $0x38] sm:$0xff]
        %s481 = scalar_lea.vmem [#allocation2], 24
        %vm482 = vcmask 31744
        %483 = vst.msk [vmem:[%s481 + $0x1] sm:$0xff] %vm482, %v473
        %484 = vst.msk [vmem:[%s481 + $0x9] sm:$0xff] %vm482, %v474
        %485 = vst.msk [vmem:[%s481 + $0x19] sm:$0xff] %vm482, %v475
        %486 = vst.msk [vmem:[%s481 + $0x21] sm:$0xff] %vm482, %v476
        %487 = vst.msk [vmem:[%s481 + $0x31] sm:$0xff] %vm482, %v477
        %488 = vst.msk [vmem:[%s481 + $0x39] sm:$0xff] %vm482, %v478
        %489 = vst.msk [vmem:[%s481 + $0x49] sm:$0xff] %vm482, %v479
        %490 = vst.msk [vmem:[%s481 + $0x51] sm:$0xff] %vm482, %v480
        %v491 = vld [vmem:[%s427] sm:$0xff]
        %v492 = vld [vmem:[%s427 + $0x8] sm:$0xff]
        %v493 = vld [vmem:[%s444] sm:$0xff]
        %v494 = vld [vmem:[%s444 + $0x8] sm:$0xff]
        %p495 = scmp.gt.s32.totalorder %s27, 0
        %s496 = scalar_select %p495, 1, 0
        %v497 = vstv %s496
        %vm498 = vcmp.eq.s32.totalorder %v497, 1
        %v499 = vsel %vm498, %v491, 0.0
        %v500 = vsel %vm498, %v492, 0.0
        %501 = vst.msk [vmem:[#allocation2 + $0x1] sm:$0xff] %vm482, %v499
        %502 = vst.msk [vmem:[#allocation2 + $0x9] sm:$0xff] %vm482, %v500
        %p503 = scmp.lt.s32.totalorder %s27, 3
        %s504 = scalar_select %p503, 1, 0
        %v505 = vstv %s504
        %vm506 = vcmp.eq.s32.totalorder %v505, 1
        %v507 = vsel %vm506, %v493, 0.0
        %v508 = vsel %vm506, %v494, 0.0
        %s509 = scalar_lea.vmem [#allocation2], 120
        %510 = vst.msk [vmem:[%s509 + $0x1] sm:$0xff] %vm482, %v507
        %511 = vst.msk [vmem:[%s509 + $0x9] sm:$0xff] %vm482, %v508
        %v512 = vld [vmem:[#allocation2] sm:$0xff]
        %v513 = vld [vmem:[#allocation2 + $0x8] sm:$0xff]
        %v514 = vld [vmem:[#allocation2 + $0x18] sm:$0xff]
        %v515 = vld [vmem:[#allocation2 + $0x20] sm:$0xff]
        %v516 = vld [vmem:[#allocation2 + $0x30] sm:$0xff]
        %v517 = vld [vmem:[#allocation2 + $0x38] sm:$0xff]
        %v518 = vld [vmem:[#allocation2 + $0x48] sm:$0xff]
        %v519 = vld [vmem:[#allocation2 + $0x50] sm:$0xff]
        %v520 = vld [vmem:[%s3] sm:$0xf]
        %v521 = vld [vmem:[#allocation2 + $0x1] sm:$0xff]
        %v522 = vld [vmem:[#allocation2 + $0x9] sm:$0xff]
        %v523 = vld [vmem:[#allocation2 + $0x19] sm:$0xff]
        %v524 = vld [vmem:[#allocation2 + $0x21] sm:$0xff]
        %v525 = vld [vmem:[#allocation2 + $0x31] sm:$0xff]
        %v526 = vld [vmem:[#allocation2 + $0x39] sm:$0xff]
        %v527 = vld [vmem:[#allocation2 + $0x49] sm:$0xff]
        %v528 = vld [vmem:[#allocation2 + $0x51] sm:$0xff]
        %s529 = scalar_lea.vmem %s3, 4
        %v530 = vld [vmem:[%s529] sm:$0xf]
        %v532 = vsel %vm482, %v521, 0
        %v535 = vsel %vm482, %v522, 0
        %v538 = vsel %vm482, %v523, 0
        %v541 = vsel %vm482, %v524, 0
        %v544 = vsel %vm482, %v525, 0
        %v547 = vsel %vm482, %v526, 0
        %v550 = vsel %vm482, %v527, 0
        %v553 = vsel %vm482, %v528, 0
        %vm555 = vcmask 1043456
        %v557 = vsel %vm555, %v530, 0
        %559 = vmatprep.subr.mxu0 0.0
        %560 = vmatpush1.msra.mxu0 %v557
        %561 = vmatprep.subr.mxu0 0.0
        %562 = vmatpush1.msra.mxu0 0.0
        %563 = vmatprep.subr.mxu0 0.0
        %564 = vmatpush1.msra.mxu0 0.0
        %565 = vmatprep.subr.mxu0 0.0
        %566 = vmatpush1.msra.mxu0 0.0
        %567 = vmatprep.subr.mxu0 0.0
        %568 = vmatpush1.msra.mxu0 0.0
        %569 = vmatprep.subr.mxu0 0.0
        %570 = vmatpush1.msra.mxu0 0.0
        %571 = vmatprep.subr.mxu0 0.0
        %572 = vmatpush1.msra.mxu0 0.0
        %573 = vmatprep.subr.mxu0 0.0
        %574 = vmatpush1.msra.mxu0 0.0
        %575 = vmatprep.subr.mxu0 0.0
        %576 = vmatpush1.msra.mxu0 0.0
        %577 = vmatprep.subr.mxu0 0.0
        %578 = vmatpush1.msra.mxu0 0.0
        %579 = vmatprep.subr.mxu0 0.0
        %580 = vmatpush1.msra.mxu0 0.0
        %581 = vmatprep.subr.mxu0 0.0
        %582 = vmatpush1.msra.mxu0 0.0
        %583 = vmatprep.subr.mxu0 0.0
        %584 = vmatpush1.msra.mxu0 0.0
        %585 = vmatprep.subr.mxu0 0.0
        %586 = vmatpush1.msra.mxu0 0.0
        %587 = vmatprep.subr.mxu0 0.0
        %588 = vmatpush1.msra.mxu0 0.0
        %589 = vmatprep.subr.mxu0 0.0
        %590 = vmatpush1.msra.mxu0 0.0
        %591 = vmatprep.subr.mxu0 0.0
        %592 = vmatpush1.msra.mxu0 0.0
        %593 = vmatprep.subr.mxu0 0.0
        %594 = vmatpush1.msra.mxu0 0.0
        %595 = vmatprep.subr.mxu0 0.0
        %596 = vmatpush1.msra.mxu0 0.0
        %597 = vmatprep.subr.mxu0 0.0
        %598 = vmatpush1.msra.mxu0 0.0
        %599 = vmatprep.subr.mxu0 0.0
        %600 = vmatpush1.msra.mxu0 0.0
        %601 = vmatprep.subr.mxu0 0.0
        %602 = vmatpush1.msra.mxu0 0.0
        %603 = vmatprep.subr.mxu0 0.0
        %604 = vmatpush1.msra.mxu0 0.0
        %605 = vmatprep.subr.mxu0 0.0
        %606 = vmatpush1.msra.mxu0 0.0
        %607 = vmatprep.subr.mxu0 0.0
        %608 = vmatpush1.msra.mxu0 0.0
        %609 = vmatprep.subr.mxu0 0.0
        %610 = vmatpush1.msra.mxu0 0.0
        %611 = vmatprep.subr.mxu0 0.0
        %612 = vmatpush1.msra.mxu0 0.0
        %613 = vmatprep.subr.mxu0 0.0
        %614 = vmatpush1.msra.mxu0 0.0
        %615 = vmatprep.subr.mxu0 0.0
        %616 = vmatpush1.msra.mxu0 0.0
        %617 = vmatprep.subr.mxu0 0.0
        %618 = vmatpush1.msra.mxu0 0.0
        %619 = vmatprep.subr.mxu0 0.0
        %620 = vmatpush1.msra.mxu0 0.0
        %621 = vmatprep.subr.mxu0 0.0
        %622 = vmatpush1.msra.mxu0 0.0
        %623 = vmatprep.mubr.f32.mxu0 0.0
        %624 = vmatmul.mubr.f32.gmra.mrb[0].mxu0 %v532
        %v625 = vpop.f32.mrb[0].mxu0
        %v626 = vadd.f32 0.0, %v625
        %v627 = vpop.f32.mrb[0].mxu0
        %628 = vmatprep.mubr.f32.mxu0 0.0
        %629 = vmatmul.mubr.f32.gmra.mrb[0].mxu0 %v535
        %v630 = vpop.f32.mrb[0].mxu0
        %v631 = vadd.f32 0.0, %v630
        %v632 = vpop.f32.mrb[0].mxu0
        %633 = vmatprep.mubr.f32.mxu0 0.0
        %634 = vmatmul.mubr.f32.gmra.mrb[0].mxu0 %v538
        %v635 = vpop.f32.mrb[0].mxu0
        %v636 = vadd.f32 0.0, %v635
        %v637 = vpop.f32.mrb[0].mxu0
        %638 = vmatprep.mubr.f32.mxu0 0.0
        %639 = vmatmul.mubr.f32.gmra.mrb[0].mxu0 %v541
        %v640 = vpop.f32.mrb[0].mxu0
        %v641 = vadd.f32 0.0, %v640
        %v642 = vpop.f32.mrb[0].mxu0
        %643 = vmatprep.mubr.f32.mxu0 0.0
        %644 = vmatmul.mubr.f32.gmra.mrb[0].mxu0 %v544
        %v645 = vpop.f32.mrb[0].mxu0
        %v646 = vadd.f32 0.0, %v645
        %v647 = vpop.f32.mrb[0].mxu0
        %648 = vmatprep.mubr.f32.mxu0 0.0
        %649 = vmatmul.mubr.f32.gmra.mrb[0].mxu0 %v547
        %v650 = vpop.f32.mrb[0].mxu0
        %v651 = vadd.f32 0.0, %v650
        %v652 = vpop.f32.mrb[0].mxu0
        %653 = vmatprep.mubr.f32.mxu0 0.0
        %654 = vmatmul.mubr.f32.gmra.mrb[0].mxu0 %v550
        %v655 = vpop.f32.mrb[0].mxu0
        %v656 = vadd.f32 0.0, %v655
        %v657 = vpop.f32.mrb[0].mxu0
        %658 = vmatprep.mubr.f32.mxu0 0.0
        %659 = vmatmul.mubr.f32.gmra.mrb[0].mxu0 %v553
        %v660 = vpop.f32.mrb[0].mxu0
        %v661 = vadd.f32 0.0, %v660
        %v662 = vpop.f32.mrb[0].mxu0
        %663 = vdwg.mxu0
        %v665 = vsel %vm482, %v512, 0
        %v668 = vsel %vm482, %v513, 0
        %v671 = vsel %vm482, %v514, 0
        %v674 = vsel %vm482, %v515, 0
        %v677 = vsel %vm482, %v516, 0
        %v680 = vsel %vm482, %v517, 0
        %v683 = vsel %vm482, %v518, 0
        %v686 = vsel %vm482, %v519, 0
        %v689 = vsel %vm555, %v520, 0
        %691 = vmatprep.subr.mxu0 0.0
        %692 = vmatpush1.msra.mxu0 %v689
        %693 = vmatprep.subr.mxu0 0.0
        %694 = vmatpush1.msra.mxu0 0.0
        %695 = vmatprep.subr.mxu0 0.0
        %696 = vmatpush1.msra.mxu0 0.0
        %697 = vmatprep.subr.mxu0 0.0
        %698 = vmatpush1.msra.mxu0 0.0
        %699 = vmatprep.subr.mxu0 0.0
        %700 = vmatpush1.msra.mxu0 0.0
        %701 = vmatprep.subr.mxu0 0.0
        %702 = vmatpush1.msra.mxu0 0.0
        %703 = vmatprep.subr.mxu0 0.0
        %704 = vmatpush1.msra.mxu0 0.0
        %705 = vmatprep.subr.mxu0 0.0
        %706 = vmatpush1.msra.mxu0 0.0
        %707 = vmatprep.subr.mxu0 0.0
        %708 = vmatpush1.msra.mxu0 0.0
        %709 = vmatprep.subr.mxu0 0.0
        %710 = vmatpush1.msra.mxu0 0.0
        %711 = vmatprep.subr.mxu0 0.0
        %712 = vmatpush1.msra.mxu0 0.0
        %713 = vmatprep.subr.mxu0 0.0
        %714 = vmatpush1.msra.mxu0 0.0
        %715 = vmatprep.subr.mxu0 0.0
        %716 = vmatpush1.msra.mxu0 0.0
        %717 = vmatprep.subr.mxu0 0.0
        %718 = vmatpush1.msra.mxu0 0.0
        %719 = vmatprep.subr.mxu0 0.0
        %720 = vmatpush1.msra.mxu0 0.0
        %721 = vmatprep.subr.mxu0 0.0
        %722 = vmatpush1.msra.mxu0 0.0
        %723 = vmatprep.subr.mxu0 0.0
        %724 = vmatpush1.msra.mxu0 0.0
        %725 = vmatprep.subr.mxu0 0.0
        %726 = vmatpush1.msra.mxu0 0.0
        %727 = vmatprep.subr.mxu0 0.0
        %728 = vmatpush1.msra.mxu0 0.0
        %729 = vmatprep.subr.mxu0 0.0
        %730 = vmatpush1.msra.mxu0 0.0
        %731 = vmatprep.subr.mxu0 0.0
        %732 = vmatpush1.msra.mxu0 0.0
        %733 = vmatprep.subr.mxu0 0.0
        %734 = vmatpush1.msra.mxu0 0.0
        %735 = vmatprep.subr.mxu0 0.0
        %736 = vmatpush1.msra.mxu0 0.0
        %737 = vmatprep.subr.mxu0 0.0
        %738 = vmatpush1.msra.mxu0 0.0
        %739 = vmatprep.subr.mxu0 0.0
        %740 = vmatpush1.msra.mxu0 0.0
        %741 = vmatprep.subr.mxu0 0.0
        %742 = vmatpush1.msra.mxu0 0.0
        %743 = vmatprep.subr.mxu0 0.0
        %744 = vmatpush1.msra.mxu0 0.0
        %745 = vmatprep.subr.mxu0 0.0
        %746 = vmatpush1.msra.mxu0 0.0
        %747 = vmatprep.subr.mxu0 0.0
        %748 = vmatpush1.msra.mxu0 0.0
        %749 = vmatprep.subr.mxu0 0.0
        %750 = vmatpush1.msra.mxu0 0.0
        %751 = vmatprep.subr.mxu0 0.0
        %752 = vmatpush1.msra.mxu0 0.0
        %753 = vmatprep.subr.mxu0 0.0
        %754 = vmatpush1.msra.mxu0 0.0
        %755 = vmatprep.mubr.f32.mxu0 0.0
        %756 = vmatmul.mubr.f32.gmra.mrb[0].mxu0 %v665
        %v757 = vpop.f32.mrb[0].mxu0
        %v758 = vadd.f32 %v626, %v757
        %v759 = vpop.f32.mrb[0].mxu0
        %760 = vmatprep.mubr.f32.mxu0 0.0
        %761 = vmatmul.mubr.f32.gmra.mrb[0].mxu0 %v668
        %v762 = vpop.f32.mrb[0].mxu0
        %v763 = vadd.f32 %v631, %v762
        %v764 = vpop.f32.mrb[0].mxu0
        %765 = vmatprep.mubr.f32.mxu0 0.0
        %766 = vmatmul.mubr.f32.gmra.mrb[0].mxu0 %v671
        %v767 = vpop.f32.mrb[0].mxu0
        %v768 = vadd.f32 %v636, %v767
        %v769 = vpop.f32.mrb[0].mxu0
        %770 = vmatprep.mubr.f32.mxu0 0.0
        %771 = vmatmul.mubr.f32.gmra.mrb[0].mxu0 %v674
        %v772 = vpop.f32.mrb[0].mxu0
        %v773 = vadd.f32 %v641, %v772
        %v774 = vpop.f32.mrb[0].mxu0
        %775 = vmatprep.mubr.f32.mxu0 0.0
        %776 = vmatmul.mubr.f32.gmra.mrb[0].mxu0 %v677
        %v777 = vpop.f32.mrb[0].mxu0
        %v778 = vadd.f32 %v646, %v777
        %v779 = vpop.f32.mrb[0].mxu0
        %780 = vmatprep.mubr.f32.mxu0 0.0
        %781 = vmatmul.mubr.f32.gmra.mrb[0].mxu0 %v680
        %v782 = vpop.f32.mrb[0].mxu0
        %v783 = vadd.f32 %v651, %v782
        %v784 = vpop.f32.mrb[0].mxu0
        %785 = vmatprep.mubr.f32.mxu0 0.0
        %786 = vmatmul.mubr.f32.gmra.mrb[0].mxu0 %v683
        %v787 = vpop.f32.mrb[0].mxu0
        %v788 = vadd.f32 %v656, %v787
        %v789 = vpop.f32.mrb[0].mxu0
        %790 = vmatprep.mubr.f32.mxu0 0.0
        %791 = vmatmul.mubr.f32.gmra.mrb[0].mxu0 %v686
        %v792 = vpop.f32.mrb[0].mxu0
        %v793 = vadd.f32 %v661, %v792
        %v794 = vpop.f32.mrb[0].mxu0
        %795 = vdwg.mxu0
        %v796 = vld [vmem:[#allocation2 + $0x2] sm:$0xff]
        %v797 = vld [vmem:[#allocation2 + $0xa] sm:$0xff]
        %v798 = vld [vmem:[#allocation2 + $0x1a] sm:$0xff]
        %v799 = vld [vmem:[#allocation2 + $0x22] sm:$0xff]
        %v800 = vld [vmem:[#allocation2 + $0x32] sm:$0xff]
        %v801 = vld [vmem:[#allocation2 + $0x3a] sm:$0xff]
        %v802 = vld [vmem:[#allocation2 + $0x4a] sm:$0xff]
        %v803 = vld [vmem:[#allocation2 + $0x52] sm:$0xff]
        %s804 = scalar_lea.vmem %s3, 8
        %v805 = vld [vmem:[%s804] sm:$0xf]
        %v807 = vsel %vm482, %v796, 0
        %v810 = vsel %vm482, %v797, 0
        %v813 = vsel %vm482, %v798, 0
        %v816 = vsel %vm482, %v799, 0
        %v819 = vsel %vm482, %v800, 0
        %v822 = vsel %vm482, %v801, 0
        %v825 = vsel %vm482, %v802, 0
        %v828 = vsel %vm482, %v803, 0
        %v831 = vsel %vm555, %v805, 0
        %833 = vmatprep.subr.mxu0 0.0
        %834 = vmatpush1.msra.mxu0 %v831
        %835 = vmatprep.subr.mxu0 0.0
        %836 = vmatpush1.msra.mxu0 0.0
        %837 = vmatprep.subr.mxu0 0.0
        %838 = vmatpush1.msra.mxu0 0.0
        %839 = vmatprep.subr.mxu0 0.0
        %840 = vmatpush1.msra.mxu0 0.0
        %841 = vmatprep.subr.mxu0 0.0
        %842 = vmatpush1.msra.mxu0 0.0
        %843 = vmatprep.subr.mxu0 0.0
        %844 = vmatpush1.msra.mxu0 0.0
        %845 = vmatprep.subr.mxu0 0.0
        %846 = vmatpush1.msra.mxu0 0.0
        %847 = vmatprep.subr.mxu0 0.0
        %848 = vmatpush1.msra.mxu0 0.0
        %849 = vmatprep.subr.mxu0 0.0
        %850 = vmatpush1.msra.mxu0 0.0
        %851 = vmatprep.subr.mxu0 0.0
        %852 = vmatpush1.msra.mxu0 0.0
        %853 = vmatprep.subr.mxu0 0.0
        %854 = vmatpush1.msra.mxu0 0.0
        %855 = vmatprep.subr.mxu0 0.0
        %856 = vmatpush1.msra.mxu0 0.0
        %857 = vmatprep.subr.mxu0 0.0
        %858 = vmatpush1.msra.mxu0 0.0
        %859 = vmatprep.subr.mxu0 0.0
        %860 = vmatpush1.msra.mxu0 0.0
        %861 = vmatprep.subr.mxu0 0.0
        %862 = vmatpush1.msra.mxu0 0.0
        %863 = vmatprep.subr.mxu0 0.0
        %864 = vmatpush1.msra.mxu0 0.0
        %865 = vmatprep.subr.mxu0 0.0
        %866 = vmatpush1.msra.mxu0 0.0
        %867 = vmatprep.subr.mxu0 0.0
        %868 = vmatpush1.msra.mxu0 0.0
        %869 = vmatprep.subr.mxu0 0.0
        %870 = vmatpush1.msra.mxu0 0.0
        %871 = vmatprep.subr.mxu0 0.0
        %872 = vmatpush1.msra.mxu0 0.0
        %873 = vmatprep.subr.mxu0 0.0
        %874 = vmatpush1.msra.mxu0 0.0
        %875 = vmatprep.subr.mxu0 0.0
        %876 = vmatpush1.msra.mxu0 0.0
        %877 = vmatprep.subr.mxu0 0.0
        %878 = vmatpush1.msra.mxu0 0.0
        %879 = vmatprep.subr.mxu0 0.0
        %880 = vmatpush1.msra.mxu0 0.0
        %881 = vmatprep.subr.mxu0 0.0
        %882 = vmatpush1.msra.mxu0 0.0
        %883 = vmatprep.subr.mxu0 0.0
        %884 = vmatpush1.msra.mxu0 0.0
        %885 = vmatprep.subr.mxu0 0.0
        %886 = vmatpush1.msra.mxu0 0.0
        %887 = vmatprep.subr.mxu0 0.0
        %888 = vmatpush1.msra.mxu0 0.0
        %889 = vmatprep.subr.mxu0 0.0
        %890 = vmatpush1.msra.mxu0 0.0
        %891 = vmatprep.subr.mxu0 0.0
        %892 = vmatpush1.msra.mxu0 0.0
        %893 = vmatprep.subr.mxu0 0.0
        %894 = vmatpush1.msra.mxu0 0.0
        %895 = vmatprep.subr.mxu0 0.0
        %896 = vmatpush1.msra.mxu0 0.0
        %897 = vmatprep.mubr.f32.mxu0 0.0
        %898 = vmatmul.mubr.f32.gmra.mrb[0].mxu0 %v807
        %v899 = vpop.f32.mrb[0].mxu0
        %v900 = vadd.f32 0.0, %v899
        %v901 = vpop.f32.mrb[0].mxu0
        %902 = vmatprep.mubr.f32.mxu0 0.0
        %903 = vmatmul.mubr.f32.gmra.mrb[0].mxu0 %v810
        %v904 = vpop.f32.mrb[0].mxu0
        %v905 = vadd.f32 0.0, %v904
        %v906 = vpop.f32.mrb[0].mxu0
        %907 = vmatprep.mubr.f32.mxu0 0.0
        %908 = vmatmul.mubr.f32.gmra.mrb[0].mxu0 %v813
        %v909 = vpop.f32.mrb[0].mxu0
        %v910 = vadd.f32 0.0, %v909
        %v911 = vpop.f32.mrb[0].mxu0
        %912 = vmatprep.mubr.f32.mxu0 0.0
        %913 = vmatmul.mubr.f32.gmra.mrb[0].mxu0 %v816
        %v914 = vpop.f32.mrb[0].mxu0
        %v915 = vadd.f32 0.0, %v914
        %v916 = vpop.f32.mrb[0].mxu0
        %917 = vmatprep.mubr.f32.mxu0 0.0
        %918 = vmatmul.mubr.f32.gmra.mrb[0].mxu0 %v819
        %v919 = vpop.f32.mrb[0].mxu0
        %v920 = vadd.f32 0.0, %v919
        %v921 = vpop.f32.mrb[0].mxu0
        %922 = vmatprep.mubr.f32.mxu0 0.0
        %923 = vmatmul.mubr.f32.gmra.mrb[0].mxu0 %v822
        %v924 = vpop.f32.mrb[0].mxu0
        %v925 = vadd.f32 0.0, %v924
        %v926 = vpop.f32.mrb[0].mxu0
        %927 = vmatprep.mubr.f32.mxu0 0.0
        %928 = vmatmul.mubr.f32.gmra.mrb[0].mxu0 %v825
        %v929 = vpop.f32.mrb[0].mxu0
        %v930 = vadd.f32 0.0, %v929
        %v931 = vpop.f32.mrb[0].mxu0
        %932 = vmatprep.mubr.f32.mxu0 0.0
        %933 = vmatmul.mubr.f32.gmra.mrb[0].mxu0 %v828
        %v934 = vpop.f32.mrb[0].mxu0
        %v935 = vadd.f32 0.0, %v934
        %v936 = vpop.f32.mrb[0].mxu0
        %937 = vdwg.mxu0
        %v938 = vadd.f32 %v758, %v900
        %v939 = vadd.f32 %v763, %v905
        %v940 = vadd.f32 %v768, %v910
        %v941 = vadd.f32 %v773, %v915
        %v942 = vadd.f32 %v778, %v920
        %v943 = vadd.f32 %v783, %v925
        %v944 = vadd.f32 %v788, %v930
        %v945 = vadd.f32 %v793, %v935
        %v946 = vld [vmem:[%s481] sm:$0xff]
        %v947 = vld [vmem:[%s481 + $0x8] sm:$0xff]
        %v948 = vld [vmem:[%s481 + $0x18] sm:$0xff]
        %v949 = vld [vmem:[%s481 + $0x20] sm:$0xff]
        %v950 = vld [vmem:[%s481 + $0x30] sm:$0xff]
        %v951 = vld [vmem:[%s481 + $0x38] sm:$0xff]
        %v952 = vld [vmem:[%s481 + $0x48] sm:$0xff]
        %v953 = vld [vmem:[%s481 + $0x50] sm:$0xff]
        %s954 = scalar_lea.vmem %s3, 12
        %v955 = vld [vmem:[%s954] sm:$0xf]
        %v957 = vsel %vm482, %v946, 0
        %v960 = vsel %vm482, %v947, 0
        %v963 = vsel %vm482, %v948, 0
        %v966 = vsel %vm482, %v949, 0
        %v969 = vsel %vm482, %v950, 0
        %v972 = vsel %vm482, %v951, 0
        %v975 = vsel %vm482, %v952, 0
        %v978 = vsel %vm482, %v953, 0
        %v981 = vsel %vm555, %v955, 0
        %983 = vmatprep.subr.mxu0 0.0
        %984 = vmatpush1.msra.mxu0 %v981
        %985 = vmatprep.subr.mxu0 0.0
        %986 = vmatpush1.msra.mxu0 0.0
        %987 = vmatprep.subr.mxu0 0.0
        %988 = vmatpush1.msra.mxu0 0.0
        %989 = vmatprep.subr.mxu0 0.0
        %990 = vmatpush1.msra.mxu0 0.0
        %991 = vmatprep.subr.mxu0 0.0
        %992 = vmatpush1.msra.mxu0 0.0
        %993 = vmatprep.subr.mxu0 0.0
        %994 = vmatpush1.msra.mxu0 0.0
        %995 = vmatprep.subr.mxu0 0.0
        %996 = vmatpush1.msra.mxu0 0.0
        %997 = vmatprep.subr.mxu0 0.0
        %998 = vmatpush1.msra.mxu0 0.0
        %999 = vmatprep.subr.mxu0 0.0
        %1000 = vmatpush1.msra.mxu0 0.0
        %1001 = vmatprep.subr.mxu0 0.0
        %1002 = vmatpush1.msra.mxu0 0.0
        %1003 = vmatprep.subr.mxu0 0.0
        %1004 = vmatpush1.msra.mxu0 0.0
        %1005 = vmatprep.subr.mxu0 0.0
        %1006 = vmatpush1.msra.mxu0 0.0
        %1007 = vmatprep.subr.mxu0 0.0
        %1008 = vmatpush1.msra.mxu0 0.0
        %1009 = vmatprep.subr.mxu0 0.0
        %1010 = vmatpush1.msra.mxu0 0.0
        %1011 = vmatprep.subr.mxu0 0.0
        %1012 = vmatpush1.msra.mxu0 0.0
        %1013 = vmatprep.subr.mxu0 0.0
        %1014 = vmatpush1.msra.mxu0 0.0
        %1015 = vmatprep.subr.mxu0 0.0
        %1016 = vmatpush1.msra.mxu0 0.0
        %1017 = vmatprep.subr.mxu0 0.0
        %1018 = vmatpush1.msra.mxu0 0.0
        %1019 = vmatprep.subr.mxu0 0.0
        %1020 = vmatpush1.msra.mxu0 0.0
        %1021 = vmatprep.subr.mxu0 0.0
        %1022 = vmatpush1.msra.mxu0 0.0
        %1023 = vmatprep.subr.mxu0 0.0
        %1024 = vmatpush1.msra.mxu0 0.0
        %1025 = vmatprep.subr.mxu0 0.0
        %1026 = vmatpush1.msra.mxu0 0.0
        %1027 = vmatprep.subr.mxu0 0.0
        %1028 = vmatpush1.msra.mxu0 0.0
        %1029 = vmatprep.subr.mxu0 0.0
        %1030 = vmatpush1.msra.mxu0 0.0
        %1031 = vmatprep.subr.mxu0 0.0
        %1032 = vmatpush1.msra.mxu0 0.0
        %1033 = vmatprep.subr.mxu0 0.0
        %1034 = vmatpush1.msra.mxu0 0.0
        %1035 = vmatprep.subr.mxu0 0.0
        %1036 = vmatpush1.msra.mxu0 0.0
        %1037 = vmatprep.subr.mxu0 0.0
        %1038 = vmatpush1.msra.mxu0 0.0
        %1039 = vmatprep.subr.mxu0 0.0
        %1040 = vmatpush1.msra.mxu0 0.0
        %1041 = vmatprep.subr.mxu0 0.0
        %1042 = vmatpush1.msra.mxu0 0.0
        %1043 = vmatprep.subr.mxu0 0.0
        %1044 = vmatpush1.msra.mxu0 0.0
        %1045 = vmatprep.subr.mxu0 0.0
        %1046 = vmatpush1.msra.mxu0 0.0
        %1047 = vmatprep.mubr.f32.mxu0 0.0
        %1048 = vmatmul.mubr.f32.gmra.mrb[0].mxu0 %v957
        %v1049 = vpop.f32.mrb[0].mxu0
        %v1050 = vadd.f32 0.0, %v1049
        %v1051 = vpop.f32.mrb[0].mxu0
        %1052 = vmatprep.mubr.f32.mxu0 0.0
        %1053 = vmatmul.mubr.f32.gmra.mrb[0].mxu0 %v960
        %v1054 = vpop.f32.mrb[0].mxu0
        %v1055 = vadd.f32 0.0, %v1054
        %v1056 = vpop.f32.mrb[0].mxu0
        %1057 = vmatprep.mubr.f32.mxu0 0.0
        %1058 = vmatmul.mubr.f32.gmra.mrb[0].mxu0 %v963
        %v1059 = vpop.f32.mrb[0].mxu0
        %v1060 = vadd.f32 0.0, %v1059
        %v1061 = vpop.f32.mrb[0].mxu0
        %1062 = vmatprep.mubr.f32.mxu0 0.0
        %1063 = vmatmul.mubr.f32.gmra.mrb[0].mxu0 %v966
        %v1064 = vpop.f32.mrb[0].mxu0
        %v1065 = vadd.f32 0.0, %v1064
        %v1066 = vpop.f32.mrb[0].mxu0
        %1067 = vmatprep.mubr.f32.mxu0 0.0
        %1068 = vmatmul.mubr.f32.gmra.mrb[0].mxu0 %v969
        %v1069 = vpop.f32.mrb[0].mxu0
        %v1070 = vadd.f32 0.0, %v1069
        %v1071 = vpop.f32.mrb[0].mxu0
        %1072 = vmatprep.mubr.f32.mxu0 0.0
        %1073 = vmatmul.mubr.f32.gmra.mrb[0].mxu0 %v972
        %v1074 = vpop.f32.mrb[0].mxu0
        %v1075 = vadd.f32 0.0, %v1074
        %v1076 = vpop.f32.mrb[0].mxu0
        %1077 = vmatprep.mubr.f32.mxu0 0.0
        %1078 = vmatmul.mubr.f32.gmra.mrb[0].mxu0 %v975
        %v1079 = vpop.f32.mrb[0].mxu0
        %v1080 = vadd.f32 0.0, %v1079
        %v1081 = vpop.f32.mrb[0].mxu0
        %1082 = vmatprep.mubr.f32.mxu0 0.0
        %1083 = vmatmul.mubr.f32.gmra.mrb[0].mxu0 %v978
        %v1084 = vpop.f32.mrb[0].mxu0
        %v1085 = vadd.f32 0.0, %v1084
        %v1086 = vpop.f32.mrb[0].mxu0
        %1087 = vdwg.mxu0
        %v1088 = vadd.f32 %v938, %v1050
        %v1089 = vadd.f32 %v939, %v1055
        %v1090 = vadd.f32 %v940, %v1060
        %v1091 = vadd.f32 %v941, %v1065
        %v1092 = vadd.f32 %v942, %v1070
        %v1093 = vadd.f32 %v943, %v1075
        %v1094 = vadd.f32 %v944, %v1080
        %v1095 = vadd.f32 %v945, %v1085
        %v1096 = vld [vmem:[%s481 + $0x1] sm:$0xff]
        %v1097 = vld [vmem:[%s481 + $0x9] sm:$0xff]
        %v1098 = vld [vmem:[%s481 + $0x19] sm:$0xff]
        %v1099 = vld [vmem:[%s481 + $0x21] sm:$0xff]
        %v1100 = vld [vmem:[%s481 + $0x31] sm:$0xff]
        %v1101 = vld [vmem:[%s481 + $0x39] sm:$0xff]
        %v1102 = vld [vmem:[%s481 + $0x49] sm:$0xff]
        %v1103 = vld [vmem:[%s481 + $0x51] sm:$0xff]
        %s1104 = scalar_lea.vmem %s3, 16
        %v1105 = vld [vmem:[%s1104] sm:$0xf]
        %v1107 = vsel %vm482, %v1096, 0
        %v1110 = vsel %vm482, %v1097, 0
        %v1113 = vsel %vm482, %v1098, 0
        %v1116 = vsel %vm482, %v1099, 0
        %v1119 = vsel %vm482, %v1100, 0
        %v1122 = vsel %vm482, %v1101, 0
        %v1125 = vsel %vm482, %v1102, 0
        %v1128 = vsel %vm482, %v1103, 0
        %v1131 = vsel %vm555, %v1105, 0
        %1133 = vmatprep.subr.mxu0 0.0
        %1134 = vmatpush1.msra.mxu0 %v1131
        %1135 = vmatprep.subr.mxu0 0.0
        %1136 = vmatpush1.msra.mxu0 0.0
        %1137 = vmatprep.subr.mxu0 0.0
        %1138 = vmatpush1.msra.mxu0 0.0
        %1139 = vmatprep.subr.mxu0 0.0
        %1140 = vmatpush1.msra.mxu0 0.0
        %1141 = vmatprep.subr.mxu0 0.0
        %1142 = vmatpush1.msra.mxu0 0.0
        %1143 = vmatprep.subr.mxu0 0.0
        %1144 = vmatpush1.msra.mxu0 0.0
        %1145 = vmatprep.subr.mxu0 0.0
        %1146 = vmatpush1.msra.mxu0 0.0
        %1147 = vmatprep.subr.mxu0 0.0
        %1148 = vmatpush1.msra.mxu0 0.0
        %1149 = vmatprep.subr.mxu0 0.0
        %1150 = vmatpush1.msra.mxu0 0.0
        %1151 = vmatprep.subr.mxu0 0.0
        %1152 = vmatpush1.msra.mxu0 0.0
        %1153 = vmatprep.subr.mxu0 0.0
        %1154 = vmatpush1.msra.mxu0 0.0
        %1155 = vmatprep.subr.mxu0 0.0
        %1156 = vmatpush1.msra.mxu0 0.0
        %1157 = vmatprep.subr.mxu0 0.0
        %1158 = vmatpush1.msra.mxu0 0.0
        %1159 = vmatprep.subr.mxu0 0.0
        %1160 = vmatpush1.msra.mxu0 0.0
        %1161 = vmatprep.subr.mxu0 0.0
        %1162 = vmatpush1.msra.mxu0 0.0
        %1163 = vmatprep.subr.mxu0 0.0
        %1164 = vmatpush1.msra.mxu0 0.0
        %1165 = vmatprep.subr.mxu0 0.0
        %1166 = vmatpush1.msra.mxu0 0.0
        %1167 = vmatprep.subr.mxu0 0.0
        %1168 = vmatpush1.msra.mxu0 0.0
        %1169 = vmatprep.subr.mxu0 0.0
        %1170 = vmatpush1.msra.mxu0 0.0
        %1171 = vmatprep.subr.mxu0 0.0
        %1172 = vmatpush1.msra.mxu0 0.0
        %1173 = vmatprep.subr.mxu0 0.0
        %1174 = vmatpush1.msra.mxu0 0.0
        %1175 = vmatprep.subr.mxu0 0.0
        %1176 = vmatpush1.msra.mxu0 0.0
        %1177 = vmatprep.subr.mxu0 0.0
        %1178 = vmatpush1.msra.mxu0 0.0
        %1179 = vmatprep.subr.mxu0 0.0
        %1180 = vmatpush1.msra.mxu0 0.0
        %1181 = vmatprep.subr.mxu0 0.0
        %1182 = vmatpush1.msra.mxu0 0.0
        %1183 = vmatprep.subr.mxu0 0.0
        %1184 = vmatpush1.msra.mxu0 0.0
        %1185 = vmatprep.subr.mxu0 0.0
        %1186 = vmatpush1.msra.mxu0 0.0
        %1187 = vmatprep.subr.mxu0 0.0
        %1188 = vmatpush1.msra.mxu0 0.0
        %1189 = vmatprep.subr.mxu0 0.0
        %1190 = vmatpush1.msra.mxu0 0.0
        %1191 = vmatprep.subr.mxu0 0.0
        %1192 = vmatpush1.msra.mxu0 0.0
        %1193 = vmatprep.subr.mxu0 0.0
        %1194 = vmatpush1.msra.mxu0 0.0
        %1195 = vmatprep.subr.mxu0 0.0
        %1196 = vmatpush1.msra.mxu0 0.0
        %1197 = vmatprep.mubr.f32.mxu0 0.0
        %1198 = vmatmul.mubr.f32.gmra.mrb[0].mxu0 %v1107
        %v1199 = vpop.f32.mrb[0].mxu0
        %v1200 = vadd.f32 0.0, %v1199
        %v1201 = vpop.f32.mrb[0].mxu0
        %1202 = vmatprep.mubr.f32.mxu0 0.0
        %1203 = vmatmul.mubr.f32.gmra.mrb[0].mxu0 %v1110
        %v1204 = vpop.f32.mrb[0].mxu0
        %v1205 = vadd.f32 0.0, %v1204
        %v1206 = vpop.f32.mrb[0].mxu0
        %1207 = vmatprep.mubr.f32.mxu0 0.0
        %1208 = vmatmul.mubr.f32.gmra.mrb[0].mxu0 %v1113
        %v1209 = vpop.f32.mrb[0].mxu0
        %v1210 = vadd.f32 0.0, %v1209
        %v1211 = vpop.f32.mrb[0].mxu0
        %1212 = vmatprep.mubr.f32.mxu0 0.0
        %1213 = vmatmul.mubr.f32.gmra.mrb[0].mxu0 %v1116
        %v1214 = vpop.f32.mrb[0].mxu0
        %v1215 = vadd.f32 0.0, %v1214
        %v1216 = vpop.f32.mrb[0].mxu0
        %1217 = vmatprep.mubr.f32.mxu0 0.0
        %1218 = vmatmul.mubr.f32.gmra.mrb[0].mxu0 %v1119
        %v1219 = vpop.f32.mrb[0].mxu0
        %v1220 = vadd.f32 0.0, %v1219
        %v1221 = vpop.f32.mrb[0].mxu0
        %1222 = vmatprep.mubr.f32.mxu0 0.0
        %1223 = vmatmul.mubr.f32.gmra.mrb[0].mxu0 %v1122
        %v1224 = vpop.f32.mrb[0].mxu0
        %v1225 = vadd.f32 0.0, %v1224
        %v1226 = vpop.f32.mrb[0].mxu0
        %1227 = vmatprep.mubr.f32.mxu0 0.0
        %1228 = vmatmul.mubr.f32.gmra.mrb[0].mxu0 %v1125
        %v1229 = vpop.f32.mrb[0].mxu0
        %v1230 = vadd.f32 0.0, %v1229
        %v1231 = vpop.f32.mrb[0].mxu0
        %1232 = vmatprep.mubr.f32.mxu0 0.0
        %1233 = vmatmul.mubr.f32.gmra.mrb[0].mxu0 %v1128
        %v1234 = vpop.f32.mrb[0].mxu0
        %v1235 = vadd.f32 0.0, %v1234
        %v1236 = vpop.f32.mrb[0].mxu0
        %1237 = vdwg.mxu0
        %v1238 = vadd.f32 %v1088, %v1200
        %v1239 = vadd.f32 %v1089, %v1205
        %v1240 = vadd.f32 %v1090, %v1210
        %v1241 = vadd.f32 %v1091, %v1215
        %v1242 = vadd.f32 %v1092, %v1220
        %v1243 = vadd.f32 %v1093, %v1225
        %v1244 = vadd.f32 %v1094, %v1230
        %v1245 = vadd.f32 %v1095, %v1235
        %v1246 = vld [vmem:[%s481 + $0x2] sm:$0xff]
        %v1247 = vld [vmem:[%s481 + $0xa] sm:$0xff]
        %v1248 = vld [vmem:[%s481 + $0x1a] sm:$0xff]
        %v1249 = vld [vmem:[%s481 + $0x22] sm:$0xff]
        %v1250 = vld [vmem:[%s481 + $0x32] sm:$0xff]
        %v1251 = vld [vmem:[%s481 + $0x3a] sm:$0xff]
        %v1252 = vld [vmem:[%s481 + $0x4a] sm:$0xff]
        %v1253 = vld [vmem:[%s481 + $0x52] sm:$0xff]
        %s1254 = scalar_lea.vmem %s3, 20
        %v1255 = vld [vmem:[%s1254] sm:$0xf]
        %v1257 = vsel %vm482, %v1246, 0
        %v1260 = vsel %vm482, %v1247, 0
        %v1263 = vsel %vm482, %v1248, 0
        %v1266 = vsel %vm482, %v1249, 0
        %v1269 = vsel %vm482, %v1250, 0
        %v1272 = vsel %vm482, %v1251, 0
        %v1275 = vsel %vm482, %v1252, 0
        %v1278 = vsel %vm482, %v1253, 0
        %v1281 = vsel %vm555, %v1255, 0
        %1283 = vmatprep.subr.mxu0 0.0
        %1284 = vmatpush1.msra.mxu0 %v1281
        %1285 = vmatprep.subr.mxu0 0.0
        %1286 = vmatpush1.msra.mxu0 0.0
        %1287 = vmatprep.subr.mxu0 0.0
        %1288 = vmatpush1.msra.mxu0 0.0
        %1289 = vmatprep.subr.mxu0 0.0
        %1290 = vmatpush1.msra.mxu0 0.0
        %1291 = vmatprep.subr.mxu0 0.0
        %1292 = vmatpush1.msra.mxu0 0.0
        %1293 = vmatprep.subr.mxu0 0.0
        %1294 = vmatpush1.msra.mxu0 0.0
        %1295 = vmatprep.subr.mxu0 0.0
        %1296 = vmatpush1.msra.mxu0 0.0
        %1297 = vmatprep.subr.mxu0 0.0
        %1298 = vmatpush1.msra.mxu0 0.0
        %1299 = vmatprep.subr.mxu0 0.0
        %1300 = vmatpush1.msra.mxu0 0.0
        %1301 = vmatprep.subr.mxu0 0.0
        %1302 = vmatpush1.msra.mxu0 0.0
        %1303 = vmatprep.subr.mxu0 0.0
        %1304 = vmatpush1.msra.mxu0 0.0
        %1305 = vmatprep.subr.mxu0 0.0
        %1306 = vmatpush1.msra.mxu0 0.0
        %1307 = vmatprep.subr.mxu0 0.0
        %1308 = vmatpush1.msra.mxu0 0.0
        %1309 = vmatprep.subr.mxu0 0.0
        %1310 = vmatpush1.msra.mxu0 0.0
        %1311 = vmatprep.subr.mxu0 0.0
        %1312 = vmatpush1.msra.mxu0 0.0
        %1313 = vmatprep.subr.mxu0 0.0
        %1314 = vmatpush1.msra.mxu0 0.0
        %1315 = vmatprep.subr.mxu0 0.0
        %1316 = vmatpush1.msra.mxu0 0.0
        %1317 = vmatprep.subr.mxu0 0.0
        %1318 = vmatpush1.msra.mxu0 0.0
        %1319 = vmatprep.subr.mxu0 0.0
        %1320 = vmatpush1.msra.mxu0 0.0
        %1321 = vmatprep.subr.mxu0 0.0
        %1322 = vmatpush1.msra.mxu0 0.0
        %1323 = vmatprep.subr.mxu0 0.0
        %1324 = vmatpush1.msra.mxu0 0.0
        %1325 = vmatprep.subr.mxu0 0.0
        %1326 = vmatpush1.msra.mxu0 0.0
        %1327 = vmatprep.subr.mxu0 0.0
        %1328 = vmatpush1.msra.mxu0 0.0
        %1329 = vmatprep.subr.mxu0 0.0
        %1330 = vmatpush1.msra.mxu0 0.0
        %1331 = vmatprep.subr.mxu0 0.0
        %1332 = vmatpush1.msra.mxu0 0.0
        %1333 = vmatprep.subr.mxu0 0.0
        %1334 = vmatpush1.msra.mxu0 0.0
        %1335 = vmatprep.subr.mxu0 0.0
        %1336 = vmatpush1.msra.mxu0 0.0
        %1337 = vmatprep.subr.mxu0 0.0
        %1338 = vmatpush1.msra.mxu0 0.0
        %1339 = vmatprep.subr.mxu0 0.0
        %1340 = vmatpush1.msra.mxu0 0.0
        %1341 = vmatprep.subr.mxu0 0.0
        %1342 = vmatpush1.msra.mxu0 0.0
        %1343 = vmatprep.subr.mxu0 0.0
        %1344 = vmatpush1.msra.mxu0 0.0
        %1345 = vmatprep.subr.mxu0 0.0
        %1346 = vmatpush1.msra.mxu0 0.0
        %1347 = vmatprep.mubr.f32.mxu0 0.0
        %1348 = vmatmul.mubr.f32.gmra.mrb[0].mxu0 %v1257
        %v1349 = vpop.f32.mrb[0].mxu0
        %v1350 = vadd.f32 0.0, %v1349
        %v1351 = vpop.f32.mrb[0].mxu0
        %1352 = vmatprep.mubr.f32.mxu0 0.0
        %1353 = vmatmul.mubr.f32.gmra.mrb[0].mxu0 %v1260
        %v1354 = vpop.f32.mrb[0].mxu0
        %v1355 = vadd.f32 0.0, %v1354
        %v1356 = vpop.f32.mrb[0].mxu0
        %1357 = vmatprep.mubr.f32.mxu0 0.0
        %1358 = vmatmul.mubr.f32.gmra.mrb[0].mxu0 %v1263
        %v1359 = vpop.f32.mrb[0].mxu0
        %v1360 = vadd.f32 0.0, %v1359
        %v1361 = vpop.f32.mrb[0].mxu0
        %1362 = vmatprep.mubr.f32.mxu0 0.0
        %1363 = vmatmul.mubr.f32.gmra.mrb[0].mxu0 %v1266
        %v1364 = vpop.f32.mrb[0].mxu0
        %v1365 = vadd.f32 0.0, %v1364
        %v1366 = vpop.f32.mrb[0].mxu0
        %1367 = vmatprep.mubr.f32.mxu0 0.0
        %1368 = vmatmul.mubr.f32.gmra.mrb[0].mxu0 %v1269
        %v1369 = vpop.f32.mrb[0].mxu0
        %v1370 = vadd.f32 0.0, %v1369
        %v1371 = vpop.f32.mrb[0].mxu0
        %1372 = vmatprep.mubr.f32.mxu0 0.0
        %1373 = vmatmul.mubr.f32.gmra.mrb[0].mxu0 %v1272
        %v1374 = vpop.f32.mrb[0].mxu0
        %v1375 = vadd.f32 0.0, %v1374
        %v1376 = vpop.f32.mrb[0].mxu0
        %1377 = vmatprep.mubr.f32.mxu0 0.0
        %1378 = vmatmul.mubr.f32.gmra.mrb[0].mxu0 %v1275
        %v1379 = vpop.f32.mrb[0].mxu0
        %v1380 = vadd.f32 0.0, %v1379
        %v1381 = vpop.f32.mrb[0].mxu0
        %1382 = vmatprep.mubr.f32.mxu0 0.0
        %1383 = vmatmul.mubr.f32.gmra.mrb[0].mxu0 %v1278
        %v1384 = vpop.f32.mrb[0].mxu0
        %v1385 = vadd.f32 0.0, %v1384
        %v1386 = vpop.f32.mrb[0].mxu0
        %1387 = vdwg.mxu0
        %v1388 = vadd.f32 %v1238, %v1350
        %v1389 = vadd.f32 %v1239, %v1355
        %v1390 = vadd.f32 %v1240, %v1360
        %v1391 = vadd.f32 %v1241, %v1365
        %v1392 = vadd.f32 %v1242, %v1370
        %v1393 = vadd.f32 %v1243, %v1375
        %v1394 = vadd.f32 %v1244, %v1380
        %v1395 = vadd.f32 %v1245, %v1385
        %s1396 = scalar_lea.vmem [#allocation2], 48
        %v1397 = vld [vmem:[%s1396] sm:$0xff]
        %v1398 = vld [vmem:[%s1396 + $0x8] sm:$0xff]
        %v1399 = vld [vmem:[%s1396 + $0x18] sm:$0xff]
        %v1400 = vld [vmem:[%s1396 + $0x20] sm:$0xff]
        %v1401 = vld [vmem:[%s1396 + $0x30] sm:$0xff]
        %v1402 = vld [vmem:[%s1396 + $0x38] sm:$0xff]
        %v1403 = vld [vmem:[%s1396 + $0x48] sm:$0xff]
        %v1404 = vld [vmem:[%s1396 + $0x50] sm:$0xff]
        %s1405 = scalar_lea.vmem %s3, 24
        %v1406 = vld [vmem:[%s1405] sm:$0xf]
        %v1408 = vsel %vm482, %v1397, 0
        %v1411 = vsel %vm482, %v1398, 0
        %v1414 = vsel %vm482, %v1399, 0
        %v1417 = vsel %vm482, %v1400, 0
        %v1420 = vsel %vm482, %v1401, 0
        %v1423 = vsel %vm482, %v1402, 0
        %v1426 = vsel %vm482, %v1403, 0
        %v1429 = vsel %vm482, %v1404, 0
        %v1432 = vsel %vm555, %v1406, 0
        %1434 = vmatprep.subr.mxu0 0.0
        %1435 = vmatpush1.msra.mxu0 %v1432
        %1436 = vmatprep.subr.mxu0 0.0
        %1437 = vmatpush1.msra.mxu0 0.0
        %1438 = vmatprep.subr.mxu0 0.0
        %1439 = vmatpush1.msra.mxu0 0.0
        %1440 = vmatprep.subr.mxu0 0.0
        %1441 = vmatpush1.msra.mxu0 0.0
        %1442 = vmatprep.subr.mxu0 0.0
        %1443 = vmatpush1.msra.mxu0 0.0
        %1444 = vmatprep.subr.mxu0 0.0
        %1445 = vmatpush1.msra.mxu0 0.0
        %1446 = vmatprep.subr.mxu0 0.0
        %1447 = vmatpush1.msra.mxu0 0.0
        %1448 = vmatprep.subr.mxu0 0.0
        %1449 = vmatpush1.msra.mxu0 0.0
        %1450 = vmatprep.subr.mxu0 0.0
        %1451 = vmatpush1.msra.mxu0 0.0
        %1452 = vmatprep.subr.mxu0 0.0
        %1453 = vmatpush1.msra.mxu0 0.0
        %1454 = vmatprep.subr.mxu0 0.0
        %1455 = vmatpush1.msra.mxu0 0.0
        %1456 = vmatprep.subr.mxu0 0.0
        %1457 = vmatpush1.msra.mxu0 0.0
        %1458 = vmatprep.subr.mxu0 0.0
        %1459 = vmatpush1.msra.mxu0 0.0
        %1460 = vmatprep.subr.mxu0 0.0
        %1461 = vmatpush1.msra.mxu0 0.0
        %1462 = vmatprep.subr.mxu0 0.0
        %1463 = vmatpush1.msra.mxu0 0.0
        %1464 = vmatprep.subr.mxu0 0.0
        %1465 = vmatpush1.msra.mxu0 0.0
        %1466 = vmatprep.subr.mxu0 0.0
        %1467 = vmatpush1.msra.mxu0 0.0
        %1468 = vmatprep.subr.mxu0 0.0
        %1469 = vmatpush1.msra.mxu0 0.0
        %1470 = vmatprep.subr.mxu0 0.0
        %1471 = vmatpush1.msra.mxu0 0.0
        %1472 = vmatprep.subr.mxu0 0.0
        %1473 = vmatpush1.msra.mxu0 0.0
        %1474 = vmatprep.subr.mxu0 0.0
        %1475 = vmatpush1.msra.mxu0 0.0
        %1476 = vmatprep.subr.mxu0 0.0
        %1477 = vmatpush1.msra.mxu0 0.0
        %1478 = vmatprep.subr.mxu0 0.0
        %1479 = vmatpush1.msra.mxu0 0.0
        %1480 = vmatprep.subr.mxu0 0.0
        %1481 = vmatpush1.msra.mxu0 0.0
        %1482 = vmatprep.subr.mxu0 0.0
        %1483 = vmatpush1.msra.mxu0 0.0
        %1484 = vmatprep.subr.mxu0 0.0
        %1485 = vmatpush1.msra.mxu0 0.0
        %1486 = vmatprep.subr.mxu0 0.0
        %1487 = vmatpush1.msra.mxu0 0.0
        %1488 = vmatprep.subr.mxu0 0.0
        %1489 = vmatpush1.msra.mxu0 0.0
        %1490 = vmatprep.subr.mxu0 0.0
        %1491 = vmatpush1.msra.mxu0 0.0
        %1492 = vmatprep.subr.mxu0 0.0
        %1493 = vmatpush1.msra.mxu0 0.0
        %1494 = vmatprep.subr.mxu0 0.0
        %1495 = vmatpush1.msra.mxu0 0.0
        %1496 = vmatprep.subr.mxu0 0.0
        %1497 = vmatpush1.msra.mxu0 0.0
        %1498 = vmatprep.mubr.f32.mxu0 0.0
        %1499 = vmatmul.mubr.f32.gmra.mrb[0].mxu0 %v1408
        %v1500 = vpop.f32.mrb[0].mxu0
        %v1501 = vadd.f32 0.0, %v1500
        %v1502 = vpop.f32.mrb[0].mxu0
        %1503 = vmatprep.mubr.f32.mxu0 0.0
        %1504 = vmatmul.mubr.f32.gmra.mrb[0].mxu0 %v1411
        %v1505 = vpop.f32.mrb[0].mxu0
        %v1506 = vadd.f32 0.0, %v1505
        %v1507 = vpop.f32.mrb[0].mxu0
        %1508 = vmatprep.mubr.f32.mxu0 0.0
        %1509 = vmatmul.mubr.f32.gmra.mrb[0].mxu0 %v1414
        %v1510 = vpop.f32.mrb[0].mxu0
        %v1511 = vadd.f32 0.0, %v1510
        %v1512 = vpop.f32.mrb[0].mxu0
        %1513 = vmatprep.mubr.f32.mxu0 0.0
        %1514 = vmatmul.mubr.f32.gmra.mrb[0].mxu0 %v1417
        %v1515 = vpop.f32.mrb[0].mxu0
        %v1516 = vadd.f32 0.0, %v1515
        %v1517 = vpop.f32.mrb[0].mxu0
        %1518 = vmatprep.mubr.f32.mxu0 0.0
        %1519 = vmatmul.mubr.f32.gmra.mrb[0].mxu0 %v1420
        %v1520 = vpop.f32.mrb[0].mxu0
        %v1521 = vadd.f32 0.0, %v1520
        %v1522 = vpop.f32.mrb[0].mxu0
        %1523 = vmatprep.mubr.f32.mxu0 0.0
        %1524 = vmatmul.mubr.f32.gmra.mrb[0].mxu0 %v1423
        %v1525 = vpop.f32.mrb[0].mxu0
        %v1526 = vadd.f32 0.0, %v1525
        %v1527 = vpop.f32.mrb[0].mxu0
        %1528 = vmatprep.mubr.f32.mxu0 0.0
        %1529 = vmatmul.mubr.f32.gmra.mrb[0].mxu0 %v1426
        %v1530 = vpop.f32.mrb[0].mxu0
        %v1531 = vadd.f32 0.0, %v1530
        %v1532 = vpop.f32.mrb[0].mxu0
        %1533 = vmatprep.mubr.f32.mxu0 0.0
        %1534 = vmatmul.mubr.f32.gmra.mrb[0].mxu0 %v1429
        %v1535 = vpop.f32.mrb[0].mxu0
        %v1536 = vadd.f32 0.0, %v1535
        %v1537 = vpop.f32.mrb[0].mxu0
        %1538 = vdwg.mxu0
        %v1539 = vadd.f32 %v1388, %v1501
        %v1540 = vadd.f32 %v1389, %v1506
        %v1541 = vadd.f32 %v1390, %v1511
        %v1542 = vadd.f32 %v1391, %v1516
        %v1543 = vadd.f32 %v1392, %v1521
        %v1544 = vadd.f32 %v1393, %v1526
        %v1545 = vadd.f32 %v1394, %v1531
        %v1546 = vadd.f32 %v1395, %v1536
        %v1547 = vld [vmem:[%s1396 + $0x1] sm:$0xff]
        %v1548 = vld [vmem:[%s1396 + $0x9] sm:$0xff]
        %v1549 = vld [vmem:[%s1396 + $0x19] sm:$0xff]
        %v1550 = vld [vmem:[%s1396 + $0x21] sm:$0xff]
        %v1551 = vld [vmem:[%s1396 + $0x31] sm:$0xff]
        %v1552 = vld [vmem:[%s1396 + $0x39] sm:$0xff]
        %v1553 = vld [vmem:[%s1396 + $0x49] sm:$0xff]
        %v1554 = vld [vmem:[%s1396 + $0x51] sm:$0xff]
        %s1555 = scalar_lea.vmem %s3, 28
        %v1556 = vld [vmem:[%s1555] sm:$0xf]
        %v1558 = vsel %vm482, %v1547, 0
        %v1561 = vsel %vm482, %v1548, 0
        %v1564 = vsel %vm482, %v1549, 0
        %v1567 = vsel %vm482, %v1550, 0
        %v1570 = vsel %vm482, %v1551, 0
        %v1573 = vsel %vm482, %v1552, 0
        %v1576 = vsel %vm482, %v1553, 0
        %v1579 = vsel %vm482, %v1554, 0
        %v1582 = vsel %vm555, %v1556, 0
        %1584 = vmatprep.subr.mxu0 0.0
        %1585 = vmatpush1.msra.mxu0 %v1582
        %1586 = vmatprep.subr.mxu0 0.0
        %1587 = vmatpush1.msra.mxu0 0.0
        %1588 = vmatprep.subr.mxu0 0.0
        %1589 = vmatpush1.msra.mxu0 0.0
        %1590 = vmatprep.subr.mxu0 0.0
        %1591 = vmatpush1.msra.mxu0 0.0
        %1592 = vmatprep.subr.mxu0 0.0
        %1593 = vmatpush1.msra.mxu0 0.0
        %1594 = vmatprep.subr.mxu0 0.0
        %1595 = vmatpush1.msra.mxu0 0.0
        %1596 = vmatprep.subr.mxu0 0.0
        %1597 = vmatpush1.msra.mxu0 0.0
        %1598 = vmatprep.subr.mxu0 0.0
        %1599 = vmatpush1.msra.mxu0 0.0
        %1600 = vmatprep.subr.mxu0 0.0
        %1601 = vmatpush1.msra.mxu0 0.0
        %1602 = vmatprep.subr.mxu0 0.0
        %1603 = vmatpush1.msra.mxu0 0.0
        %1604 = vmatprep.subr.mxu0 0.0
        %1605 = vmatpush1.msra.mxu0 0.0
        %1606 = vmatprep.subr.mxu0 0.0
        %1607 = vmatpush1.msra.mxu0 0.0
        %1608 = vmatprep.subr.mxu0 0.0
        %1609 = vmatpush1.msra.mxu0 0.0
        %1610 = vmatprep.subr.mxu0 0.0
        %1611 = vmatpush1.msra.mxu0 0.0
        %1612 = vmatprep.subr.mxu0 0.0
        %1613 = vmatpush1.msra.mxu0 0.0
        %1614 = vmatprep.subr.mxu0 0.0
        %1615 = vmatpush1.msra.mxu0 0.0
        %1616 = vmatprep.subr.mxu0 0.0
        %1617 = vmatpush1.msra.mxu0 0.0
        %1618 = vmatprep.subr.mxu0 0.0
        %1619 = vmatpush1.msra.mxu0 0.0
        %1620 = vmatprep.subr.mxu0 0.0
        %1621 = vmatpush1.msra.mxu0 0.0
        %1622 = vmatprep.subr.mxu0 0.0
        %1623 = vmatpush1.msra.mxu0 0.0
        %1624 = vmatprep.subr.mxu0 0.0
        %1625 = vmatpush1.msra.mxu0 0.0
        %1626 = vmatprep.subr.mxu0 0.0
        %1627 = vmatpush1.msra.mxu0 0.0
        %1628 = vmatprep.subr.mxu0 0.0
        %1629 = vmatpush1.msra.mxu0 0.0
        %1630 = vmatprep.subr.mxu0 0.0
        %1631 = vmatpush1.msra.mxu0 0.0
        %1632 = vmatprep.subr.mxu0 0.0
        %1633 = vmatpush1.msra.mxu0 0.0
        %1634 = vmatprep.subr.mxu0 0.0
        %1635 = vmatpush1.msra.mxu0 0.0
        %1636 = vmatprep.subr.mxu0 0.0
        %1637 = vmatpush1.msra.mxu0 0.0
        %1638 = vmatprep.subr.mxu0 0.0
        %1639 = vmatpush1.msra.mxu0 0.0
        %1640 = vmatprep.subr.mxu0 0.0
        %1641 = vmatpush1.msra.mxu0 0.0
        %1642 = vmatprep.subr.mxu0 0.0
        %1643 = vmatpush1.msra.mxu0 0.0
        %1644 = vmatprep.subr.mxu0 0.0
        %1645 = vmatpush1.msra.mxu0 0.0
        %1646 = vmatprep.subr.mxu0 0.0
        %1647 = vmatpush1.msra.mxu0 0.0
        %1648 = vmatprep.mubr.f32.mxu0 0.0
        %1649 = vmatmul.mubr.f32.gmra.mrb[0].mxu0 %v1558
        %v1650 = vpop.f32.mrb[0].mxu0
        %v1651 = vadd.f32 0.0, %v1650
        %v1652 = vpop.f32.mrb[0].mxu0
        %1653 = vmatprep.mubr.f32.mxu0 0.0
        %1654 = vmatmul.mubr.f32.gmra.mrb[0].mxu0 %v1561
        %v1655 = vpop.f32.mrb[0].mxu0
        %v1656 = vadd.f32 0.0, %v1655
        %v1657 = vpop.f32.mrb[0].mxu0
        %1658 = vmatprep.mubr.f32.mxu0 0.0
        %1659 = vmatmul.mubr.f32.gmra.mrb[0].mxu0 %v1564
        %v1660 = vpop.f32.mrb[0].mxu0
        %v1661 = vadd.f32 0.0, %v1660
        %v1662 = vpop.f32.mrb[0].mxu0
        %1663 = vmatprep.mubr.f32.mxu0 0.0
        %1664 = vmatmul.mubr.f32.gmra.mrb[0].mxu0 %v1567
        %v1665 = vpop.f32.mrb[0].mxu0
        %v1666 = vadd.f32 0.0, %v1665
        %v1667 = vpop.f32.mrb[0].mxu0
        %1668 = vmatprep.mubr.f32.mxu0 0.0
        %1669 = vmatmul.mubr.f32.gmra.mrb[0].mxu0 %v1570
        %v1670 = vpop.f32.mrb[0].mxu0
        %v1671 = vadd.f32 0.0, %v1670
        %v1672 = vpop.f32.mrb[0].mxu0
        %1673 = vmatprep.mubr.f32.mxu0 0.0
        %1674 = vmatmul.mubr.f32.gmra.mrb[0].mxu0 %v1573
        %v1675 = vpop.f32.mrb[0].mxu0
        %v1676 = vadd.f32 0.0, %v1675
        %v1677 = vpop.f32.mrb[0].mxu0
        %1678 = vmatprep.mubr.f32.mxu0 0.0
        %1679 = vmatmul.mubr.f32.gmra.mrb[0].mxu0 %v1576
        %v1680 = vpop.f32.mrb[0].mxu0
        %v1681 = vadd.f32 0.0, %v1680
        %v1682 = vpop.f32.mrb[0].mxu0
        %1683 = vmatprep.mubr.f32.mxu0 0.0
        %1684 = vmatmul.mubr.f32.gmra.mrb[0].mxu0 %v1579
        %v1685 = vpop.f32.mrb[0].mxu0
        %v1686 = vadd.f32 0.0, %v1685
        %v1687 = vpop.f32.mrb[0].mxu0
        %1688 = vdwg.mxu0
        %v1689 = vadd.f32 %v1539, %v1651
        %v1690 = vadd.f32 %v1540, %v1656
        %v1691 = vadd.f32 %v1541, %v1661
        %v1692 = vadd.f32 %v1542, %v1666
        %v1693 = vadd.f32 %v1543, %v1671
        %v1694 = vadd.f32 %v1544, %v1676
        %v1695 = vadd.f32 %v1545, %v1681
        %v1696 = vadd.f32 %v1546, %v1686
        %v1697 = vld [vmem:[%s1396 + $0x2] sm:$0xff]
        %v1698 = vld [vmem:[%s1396 + $0xa] sm:$0xff]
        %v1699 = vld [vmem:[%s1396 + $0x1a] sm:$0xff]
        %v1700 = vld [vmem:[%s1396 + $0x22] sm:$0xff]
        %v1701 = vld [vmem:[%s1396 + $0x32] sm:$0xff]
        %v1702 = vld [vmem:[%s1396 + $0x3a] sm:$0xff]
        %v1703 = vld [vmem:[%s1396 + $0x4a] sm:$0xff]
        %v1704 = vld [vmem:[%s1396 + $0x52] sm:$0xff]
        %s1705 = scalar_lea.vmem %s3, 32
        %v1706 = vld [vmem:[%s1705] sm:$0xf]
        %v1708 = vsel %vm482, %v1697, 0
        %v1711 = vsel %vm482, %v1698, 0
        %v1714 = vsel %vm482, %v1699, 0
        %v1717 = vsel %vm482, %v1700, 0
        %v1720 = vsel %vm482, %v1701, 0
        %v1723 = vsel %vm482, %v1702, 0
        %v1726 = vsel %vm482, %v1703, 0
        %v1729 = vsel %vm482, %v1704, 0
        %v1732 = vsel %vm555, %v1706, 0
        %1734 = vmatprep.subr.mxu0 0.0
        %1735 = vmatpush1.msra.mxu0 %v1732
        %1736 = vmatprep.subr.mxu0 0.0
        %1737 = vmatpush1.msra.mxu0 0.0
        %1738 = vmatprep.subr.mxu0 0.0
        %1739 = vmatpush1.msra.mxu0 0.0
        %1740 = vmatprep.subr.mxu0 0.0
        %1741 = vmatpush1.msra.mxu0 0.0
        %1742 = vmatprep.subr.mxu0 0.0
        %1743 = vmatpush1.msra.mxu0 0.0
        %1744 = vmatprep.subr.mxu0 0.0
        %1745 = vmatpush1.msra.mxu0 0.0
        %1746 = vmatprep.subr.mxu0 0.0
        %1747 = vmatpush1.msra.mxu0 0.0
        %1748 = vmatprep.subr.mxu0 0.0
        %1749 = vmatpush1.msra.mxu0 0.0
        %1750 = vmatprep.subr.mxu0 0.0
        %1751 = vmatpush1.msra.mxu0 0.0
        %1752 = vmatprep.subr.mxu0 0.0
        %1753 = vmatpush1.msra.mxu0 0.0
        %1754 = vmatprep.subr.mxu0 0.0
        %1755 = vmatpush1.msra.mxu0 0.0
        %1756 = vmatprep.subr.mxu0 0.0
        %1757 = vmatpush1.msra.mxu0 0.0
        %1758 = vmatprep.subr.mxu0 0.0
        %1759 = vmatpush1.msra.mxu0 0.0
        %1760 = vmatprep.subr.mxu0 0.0
        %1761 = vmatpush1.msra.mxu0 0.0
        %1762 = vmatprep.subr.mxu0 0.0
        %1763 = vmatpush1.msra.mxu0 0.0
        %1764 = vmatprep.subr.mxu0 0.0
        %1765 = vmatpush1.msra.mxu0 0.0
        %1766 = vmatprep.subr.mxu0 0.0
        %1767 = vmatpush1.msra.mxu0 0.0
        %1768 = vmatprep.subr.mxu0 0.0
        %1769 = vmatpush1.msra.mxu0 0.0
        %1770 = vmatprep.subr.mxu0 0.0
        %1771 = vmatpush1.msra.mxu0 0.0
        %1772 = vmatprep.subr.mxu0 0.0
        %1773 = vmatpush1.msra.mxu0 0.0
        %1774 = vmatprep.subr.mxu0 0.0
        %1775 = vmatpush1.msra.mxu0 0.0
        %1776 = vmatprep.subr.mxu0 0.0
        %1777 = vmatpush1.msra.mxu0 0.0
        %1778 = vmatprep.subr.mxu0 0.0
        %1779 = vmatpush1.msra.mxu0 0.0
        %1780 = vmatprep.subr.mxu0 0.0
        %1781 = vmatpush1.msra.mxu0 0.0
        %1782 = vmatprep.subr.mxu0 0.0
        %1783 = vmatpush1.msra.mxu0 0.0
        %1784 = vmatprep.subr.mxu0 0.0
        %1785 = vmatpush1.msra.mxu0 0.0
        %1786 = vmatprep.subr.mxu0 0.0
        %1787 = vmatpush1.msra.mxu0 0.0
        %1788 = vmatprep.subr.mxu0 0.0
        %1789 = vmatpush1.msra.mxu0 0.0
        %1790 = vmatprep.subr.mxu0 0.0
        %1791 = vmatpush1.msra.mxu0 0.0
        %1792 = vmatprep.subr.mxu0 0.0
        %1793 = vmatpush1.msra.mxu0 0.0
        %1794 = vmatprep.subr.mxu0 0.0
        %1795 = vmatpush1.msra.mxu0 0.0
        %1796 = vmatprep.subr.mxu0 0.0
        %1797 = vmatpush1.msra.mxu0 0.0
        %1798 = vmatprep.mubr.f32.mxu0 0.0
        %1799 = vmatmul.mubr.f32.gmra.mrb[0].mxu0 %v1708
        %v1800 = vpop.f32.mrb[0].mxu0
        %v1801 = vadd.f32 0.0, %v1800
        %v1802 = vpop.f32.mrb[0].mxu0
        %1803 = vmatprep.mubr.f32.mxu0 0.0
        %1804 = vmatmul.mubr.f32.gmra.mrb[0].mxu0 %v1711
        %v1805 = vpop.f32.mrb[0].mxu0
        %v1806 = vadd.f32 0.0, %v1805
        %v1807 = vpop.f32.mrb[0].mxu0
        %1808 = vmatprep.mubr.f32.mxu0 0.0
        %1809 = vmatmul.mubr.f32.gmra.mrb[0].mxu0 %v1714
        %v1810 = vpop.f32.mrb[0].mxu0
        %v1811 = vadd.f32 0.0, %v1810
        %v1812 = vpop.f32.mrb[0].mxu0
        %1813 = vmatprep.mubr.f32.mxu0 0.0
        %1814 = vmatmul.mubr.f32.gmra.mrb[0].mxu0 %v1717
        %v1815 = vpop.f32.mrb[0].mxu0
        %v1816 = vadd.f32 0.0, %v1815
        %v1817 = vpop.f32.mrb[0].mxu0
        %1818 = vmatprep.mubr.f32.mxu0 0.0
        %1819 = vmatmul.mubr.f32.gmra.mrb[0].mxu0 %v1720
        %v1820 = vpop.f32.mrb[0].mxu0
        %v1821 = vadd.f32 0.0, %v1820
        %v1822 = vpop.f32.mrb[0].mxu0
        %1823 = vmatprep.mubr.f32.mxu0 0.0
        %1824 = vmatmul.mubr.f32.gmra.mrb[0].mxu0 %v1723
        %v1825 = vpop.f32.mrb[0].mxu0
        %v1826 = vadd.f32 0.0, %v1825
        %v1827 = vpop.f32.mrb[0].mxu0
        %1828 = vmatprep.mubr.f32.mxu0 0.0
        %1829 = vmatmul.mubr.f32.gmra.mrb[0].mxu0 %v1726
        %v1830 = vpop.f32.mrb[0].mxu0
        %v1831 = vadd.f32 0.0, %v1830
        %v1832 = vpop.f32.mrb[0].mxu0
        %1833 = vmatprep.mubr.f32.mxu0 0.0
        %1834 = vmatmul.mubr.f32.gmra.mrb[0].mxu0 %v1729
        %v1835 = vpop.f32.mrb[0].mxu0
        %v1836 = vadd.f32 0.0, %v1835
        %v1837 = vpop.f32.mrb[0].mxu0
        %1838 = vdwg.mxu0
        %v1839 = vadd.f32 %v1689, %v1801
        %v1840 = vadd.f32 %v1690, %v1806
        %v1841 = vadd.f32 %v1691, %v1811
        %v1842 = vadd.f32 %v1692, %v1816
        %v1843 = vadd.f32 %v1693, %v1821
        %v1844 = vadd.f32 %v1694, %v1826
        %v1845 = vadd.f32 %v1695, %v1831
        %v1846 = vadd.f32 %v1696, %v1836
        %vm1847 = vcmask 64512
        %1848 = vst.msk [vmem:[%s458] sm:$0xff] %vm1847, %v1839
        %1849 = vst.msk [vmem:[%s458 + $0x8] sm:$0xff] %vm1847, %v1840
        %1850 = vst.msk [vmem:[%s458 + $0x10] sm:$0xff] %vm1847, %v1841
        %1851 = vst.msk [vmem:[%s458 + $0x18] sm:$0xff] %vm1847, %v1842
        %1852 = vst.msk [vmem:[%s458 + $0x20] sm:$0xff] %vm1847, %v1843
        %1853 = vst.msk [vmem:[%s458 + $0x28] sm:$0xff] %vm1847, %v1844
        %1854 = vst.msk [vmem:[%s458 + $0x30] sm:$0xff] %vm1847, %v1845
        %1855 = vst.msk [vmem:[%s458 + $0x38] sm:$0xff] %vm1847, %v1846
        %v1856 = vsel %vm1847, %v1839, 0.0
        %v1857 = vsel %vm1847, %v1840, 0.0
        %v1858 = vadd.f32 %v1856, %v1857
        %v1859 = vsel %vm1847, %v1841, 0.0
        %v1860 = vadd.f32 %v1858, %v1859
        %v1861 = vsel %vm1847, %v1842, 0.0
        %v1862 = vadd.f32 %v1860, %v1861
        %v1863 = vsel %vm1847, %v1843, 0.0
        %v1864 = vadd.f32 %v1862, %v1863
        %v1865 = vsel %vm1847, %v1844, 0.0
        %v1866 = vadd.f32 %v1864, %v1865
        %v1867 = vsel %vm1847, %v1845, 0.0
        %v1868 = vadd.f32 %v1866, %v1867
        %v1869 = vsel %vm1847, %v1846, 0.0
        %v1870 = vadd.f32 %v1868, %v1869
        %v1871 = vrot.slane %v1870, 4
        %v1872 = vadd.f32 %v1870, %v1871
        %v1873 = vrot.slane %v1872, 2
        %v1874 = vadd.f32 %v1872, %v1873
        %v1875 = vrot.slane %v1874, 1
        %v1876 = vadd.f32 %v1874, %v1875
        %v1877 = vmul.f32 %v1839, %v1839
        %v1878 = vmul.f32 %v1840, %v1840
        %v1879 = vmul.f32 %v1841, %v1841
        %v1880 = vmul.f32 %v1842, %v1842
        %v1881 = vmul.f32 %v1843, %v1843
        %v1882 = vmul.f32 %v1844, %v1844
        %v1883 = vmul.f32 %v1845, %v1845
        %v1884 = vmul.f32 %v1846, %v1846
        %v1885 = vsel %vm1847, %v1877, 0.0
        %v1886 = vsel %vm1847, %v1878, 0.0
        %v1887 = vadd.f32 %v1885, %v1886
        %v1888 = vsel %vm1847, %v1879, 0.0
        %v1889 = vadd.f32 %v1887, %v1888
        %v1890 = vsel %vm1847, %v1880, 0.0
        %v1891 = vadd.f32 %v1889, %v1890
        %v1892 = vsel %vm1847, %v1881, 0.0
        %v1893 = vadd.f32 %v1891, %v1892
        %v1894 = vsel %vm1847, %v1882, 0.0
        %v1895 = vadd.f32 %v1893, %v1894
        %v1896 = vsel %vm1847, %v1883, 0.0
        %v1897 = vadd.f32 %v1895, %v1896
        %v1898 = vsel %vm1847, %v1884, 0.0
        %v1899 = vadd.f32 %v1897, %v1898
        %v1900 = vrot.slane %v1899, 4
        %v1901 = vadd.f32 %v1899, %v1900
        %v1902 = vrot.slane %v1901, 2
        %v1903 = vadd.f32 %v1901, %v1902
        %v1904 = vrot.slane %v1903, 1
        %v1905 = vadd.f32 %v1903, %v1904
        %vm1906 = vcmask 1040384
        %v1907 = vsel %vm1906, %v1876, %v1905
        %vm1908 = vcmask 1041408
        %v1909 = vsel %vm1908, %v1907, 0.0
        %1910 = vst.msk [vmem:[%s403] sm:$0xff] %vm1847, %v1909
        %s1911 = smul.u32 4, %s27
        %p1912 = scmp.lt.s32.totalorder %s26, 1
        %s1913 = scalar_select %p1912, %s26, 1
        %p1914 = scmp.lt.s32.totalorder %s1911, 15
        %s1915 = scalar_select %p1914, %s1911, 15
        %s1916 = smul.addr %s1915, 2
        %s1917 = smul.addr %s1913, 32
        %s1918 = sadd.s32 %s1916, %s1917
        %s1919 = smul.addr %s1918, 8
        %s1920 = scalar_lea.vmem %s6, %s1919
        %s1921 = sand.u32 %s235, 1
        %s1922 = scalar_lea.sflag [#allocation4], %s1921
        %s1923 = sand.u32 %s235, 1
        %s1924 = smul.addr %s1923, 8
        %s1925 = scalar_lea.vmem [#allocation3], %s1924
        // Predicated region
        $region45: #{tpu_custom_call.1} parent=43 // pred_check
          %p1926 = pneg %p217
        $region46: #{tpu_custom_call.1} parent=43 // pred_check_branch
          %1928 = sbr.rel (%p1926) target = $region48
        $region47: #{tpu_custom_call.1} parent=43 // pred_region
          %s1929 = smul.u32 4, %s27
        $region48: #{tpu_custom_call.1} parent=43 // pred_fallthru
          _
        // Predicated region
        $region49: #{tpu_custom_call.1} parent=43 // pred_check
          %p1930 = pneg %p245
        $region50: #{tpu_custom_call.1} parent=43 // pred_check_branch
          %1932 = sbr.rel (%p1930) target = $region52
        $region51: #{tpu_custom_call.1} parent=43 // pred_region
          %s1934 = ssub.s32 128, 128
          %1935 = vsyncadd %s1922, %s1934
          %s1936 = smul.addr %s26, 4
          %s1937 = sadd.s32 %s27, %s1936
          %s1938 = smul.addr %s1937, 128
          %s1939 = scalar_lea.hbm %s7, %s1938
          %s1941 = sshll.u32 %s1925, 4
          %s1942 = int_to_ptr.vmem [resolvable:$true] %s1941
          %1944 = dma.vmem_to_hbm [thread:$0]  %s1942, 128, %s1939, %s1922
        $region52: #{tpu_custom_call.1} parent=43 // pred_fallthru
          _
      $region44: #{tpu_custom_call.1} parent=5 // pred_fallthru
        _
      %p1945 = scmp.le.s32.totalorder 2, %s17
      // Predicated region
      $region53: #{tpu_custom_call.1} parent=5 // pred_check
        %p1946 = pneg %p1945
      $region54: #{tpu_custom_call.1} parent=5 // pred_check_branch
        %1948 = sbr.rel (%p1946) target = $region56
      $region55: #{tpu_custom_call.1} parent=5 // pred_region
        %s1949 = ssub.s32 %s17, 2
        // Predicated region
        $region57: #{tpu_custom_call.1} parent=55 // pred_check
          %p1950 = pneg %p223
        $region58: #{tpu_custom_call.1} parent=55 // pred_check_branch
          %1952 = sbr.rel (%p1950) target = $region60
        $region59: #{tpu_custom_call.1} parent=55 // pred_region
          %s1953 = smul.u32 4, %s29
          %p1954 = scmp.lt.s32.totalorder %s28, 1
          %s1955 = scalar_select %p1954, %s28, 1
          %p1956 = scmp.lt.s32.totalorder %s1953, 15
          %s1957 = scalar_select %p1956, %s1953, 15
          %s1958 = smul.addr %s1957, 2
          %s1959 = smul.addr %s1955, 32
          %s1960 = sadd.s32 %s1958, %s1959
          %s1961 = smul.addr %s1960, 8
          %s1962 = scalar_lea.vmem %s6, %s1961
        $region60: #{tpu_custom_call.1} parent=55 // pred_fallthru
          _
        // Predicated region
        $region61: #{tpu_custom_call.1} parent=55 // pred_check
          %p1963 = pneg %p251
        $region62: #{tpu_custom_call.1} parent=55 // pred_check_branch
          %1965 = sbr.rel (%p1963) target = $region64
        $region63: #{tpu_custom_call.1} parent=55 // pred_region
          %s1966 = sand.u32 %s236, 1
          %s1967 = scalar_lea.sflag [#allocation4], %s1966
          %s1968 = sand.u32 %s236, 1
          %s1969 = smul.addr %s1968, 8
          %s1970 = scalar_lea.vmem [#allocation3], %s1969
          %1971 = dma.done %s1967, 128
        $region64: #{tpu_custom_call.1} parent=55 // pred_fallthru
          _
      $region56: #{tpu_custom_call.1} parent=5 // pred_fallthru
        _
    $region6: #{tpu_custom_call.1} parent=1 // loop_footer
      %s21 = sadd.s32 1, %s17
    $region7: #{tpu_custom_call.1} parent=1 // loop_footer_branch
      %16 = sbr.rel target = $region3
    $region8: #{tpu_custom_call.1} parent=1 // loop_exit
      _
    %1972 = vsyncpa [#allocation4], 1
    %s1973 = scalar_lea.sflag [#allocation4], 1
    %1974 = vsyncpa %s1973, 1

</llo_original>
